<compile_context>
chip_gen: v5e
topology: v5e:2x2
jax: 0.10.0
libtpu: 0.0.40
codegen_flags: <defaults>
</compile_context>

<pallas_src>
import functools
import math

import jax
import jax.numpy as jnp
from jax.experimental import pallas as pl
from jax.experimental.pallas import tpu as pltpu

# ------------------------- model dimensions (small, synthetic) ----------------
B = 2           # batch
C_IN = 4        # input channels
H = W = 16      # spatial
C_HID = 8       # hidden channels after the 1x1 conv
HP, WP = H // 2, W // 2
PB = HP * WP            # pooled pixels per batch element (64)
P = B * PB              # pooled pixels total (128)
FLAT = C_HID * PB       # 512
K_CAT = 16              # categorical latent size (q_y)
K_COORD = 16            # coordinate-encoding size
Z_DIM = K_CAT + K_COORD # 32


# ------------------------- fused Pallas kernel ---------------------------------

def _fused_cvae_kernel(x_ref, g_ref,
                       ecw_ref, ecb_ref, efw_ref, efb_ref,
                       ccw_ref, ccb_ref, cfw_ref, cfb_ref,
                       dfw_ref, dfb_ref, dcw_ref, dcb_ref,
                       out_ref, *, tau):
    f32 = jnp.float32
    x = x_ref[...]                                              # (C_IN, 4*P)

    # ---- 1x1 conv + ReLU for both encoders: (C_HID, C_IN) @ (C_IN, 4*P)
    he = jnp.maximum(jnp.dot(ecw_ref[...], x, preferred_element_type=f32)
                     + ecb_ref[...], 0.0)                       # (C_HID, 4*P)
    hc = jnp.maximum(jnp.dot(ccw_ref[...], x, preferred_element_type=f32)
                     + ccb_ref[...], 0.0)                       # (C_HID, 4*P)

    # ---- 2x2 maxpool: elementwise max over the four 128-lane window blocks
    def pool(h):
        w0 = h[:, 0 * P:1 * P]
        w1 = h[:, 1 * P:2 * P]
        w2 = h[:, 2 * P:3 * P]
        w3 = h[:, 3 * P:4 * P]
        m = jnp.maximum(jnp.maximum(w0, w1), jnp.maximum(w2, w3))
        # first-match winner (torch-style tie-break); local window index 0..3
        idx = jnp.where(w0 == m, 0,
              jnp.where(w1 == m, 1,
              jnp.where(w2 == m, 2, 3))).astype(jnp.int32)
        return m, idx

    m_e, idx_e = pool(he)                                       # (C_HID, P)
    m_c, _ = pool(hc)                                           # coord indices unused

    # ---- flatten to PyTorch order flat[b, c*PB + i*WP + j], all in VMEM
    def flatten_pool(m):
        rows = []
        for b in range(B):
            rows.append(jnp.concatenate(
                [m[c:c + 1, b * PB:(b + 1) * PB] for c in range(C_HID)], axis=1))
        return jnp.concatenate(rows, axis=0)                    # (B, FLAT)

    q_y = jnp.dot(flatten_pool(m_e), efw_ref[...],
                  preferred_element_type=f32) + efb_ref[...]    # (B, K_CAT)
    coord = jnp.dot(flatten_pool(m_c), cfw_ref[...],
                    preferred_element_type=f32) + cfb_ref[...]  # (B, K_COORD)

    # ---- gumbel-softmax, hard=True (forward value == one-hot(argmax))
    y = (q_y + g_ref[...]) * (1.0 / tau)
    y = y - jnp.max(y, axis=-1, keepdims=True)
    e = jnp.exp(y)
    soft = e / jnp.sum(e, axis=-1, keepdims=True)
    lane = jax.lax.broadcasted_iota(jnp.int32, soft.shape, 1)
    mx = jnp.max(soft, axis=-1, keepdims=True)
    first = jnp.min(jnp.where(soft == mx, lane, K_CAT), axis=-1, keepdims=True)
    z_hard = jnp.where(lane == first, 1.0, 0.0).astype(f32)     # (B, K_CAT)
    # TODO(synk): straight-through estimator (hard - soft.detach() + soft) is a
    # gradient-only detail; the forward value is identical.

    z = jnp.concatenate([z_hard, coord], axis=1)                # (B, Z_DIM)

    # ---- decoder FC + ReLU, re-laid to (C_HID, P) to match the pool layout
    hflat = jnp.maximum(jnp.dot(z, dfw_ref[...], preferred_element_type=f32)
                        + dfb_ref[...], 0.0)                    # (B, FLAT)
    rows = []
    for c in range(C_HID):
        seg = hflat[:, c * PB:(c + 1) * PB]                     # (B, PB)
        rows.append(jnp.concatenate(
            [seg[b:b + 1, :] for b in range(B)], axis=1))       # (1, P)
    hdec = jnp.concatenate(rows, axis=0)                        # (C_HID, P)

    # ---- 2x2 max-unpool: scatter each pooled value to its winning window slot
    unpooled = jnp.concatenate(
        [jnp.where(idx_e == k, hdec, 0.0) for k in range(4)], axis=1)  # (C_HID, 4*P)

    # ---- final 1x1 conv: (C_IN, C_HID) @ (C_HID, 4*P); lane-dense output
    out = jnp.dot(dcw_ref[...], unpooled, preferred_element_type=f32) + dcb_ref[...]
    out_ref[...] = out.astype(out_ref.dtype)


# ------------------------- layout glue (one transpose each way) ----------------

def _permute_input(x):
    # (B, C_IN, H, W) -> (C_IN, 4*B*HP*WP), columns ordered (di*2+dj, b, i, j)
    x6 = x.reshape(B, C_IN, HP, 2, WP, 2)            # (b, ci, i, di, j, dj)
    return x6.transpose(1, 3, 5, 0, 2, 4).reshape(C_IN, 4 * P)


def _unpermute_output(o):
    # (C_IN, 4*B*HP*WP) -> (B, C_IN, H, W)
    o6 = o.reshape(C_IN, 2, 2, B, HP, WP)            # (co, di, dj, b, i, j)
    return o6.transpose(3, 0, 4, 1, 5, 2).reshape(B, C_IN, H, W)


# ------------------------- CoordinateVAEModel ----------------------------------

class CoordinateVAEModel:
    """JAX/Pallas port of the PyTorch CoordinateVAEModel forward pass.

    encoder / coordinate_encoder: 1x1 conv -> ReLU -> MaxPool2d(2, return_indices)
                                  -> flatten -> Linear
    decoder: Linear -> ReLU -> reshape -> MaxUnpool2d(2) -> 1x1 conv
    The whole forward runs in a single fused Pallas kernel.
    """

    def __init__(self, params):
        self.params = params
        self.epoch = 0
        self.tau = 0.1
        self.training = True
        # TODO(synk): torch.distributions.Normal buffers (self.N) are unused in forward.

        enc = params["encoder"]
        coo = params["coordinate_encoder"]
        dec = params["decoder"]
        # Kernel-friendly weight layouts (computed once).
        self._kargs = (
            enc["conv_w"].T, enc["conv_b"].reshape(C_HID, 1),
            enc["fc_w"], enc["fc_b"].reshape(1, K_CAT),
            coo["conv_w"].T, coo["conv_b"].reshape(C_HID, 1),
            coo["fc_w"], coo["fc_b"].reshape(1, K_COORD),
            dec["fc_w"], dec["fc_b"].reshape(1, FLAT),
            dec["conv_w"].T, dec["conv_b"].reshape(C_IN, 1),
        )

    def __call__(self, x, gumbel_noise):
        self.tau = 2 * math.exp(-0.0003 * self.epoch)
        if self.training is False:
            self.tau = 0.1
        # tau is baked as a trace-time constant (fine for this forward-only use).
        fused = pl.pallas_call(
            functools.partial(_fused_cvae_kernel, tau=float(self.tau)),
            in_specs=[pl.BlockSpec(memory_space=pltpu.VMEM)] * 14,
            out_specs=pl.BlockSpec(memory_space=pltpu.VMEM),
            out_shape=jax.ShapeDtypeStruct((C_IN, 4 * P), jnp.float32),
        )
        out_cm = fused(_permute_input(x), gumbel_noise, *self._kargs)
        return _unpermute_output(out_cm)


# ------------------------- deterministic parameter init ------------------------

def init_params(key):
    ks = jax.random.split(key, 8)

    def w(k, shape, fan_in):
        return (jax.random.normal(k, shape, jnp.float32) / jnp.sqrt(fan_in)).astype(jnp.float32)

    enc = dict(conv_w=w(ks[0], (C_IN, C_HID), C_IN),
               conv_b=jnp.zeros((C_HID,), jnp.float32),
               fc_w=w(ks[1], (FLAT, K_CAT), FLAT),
               fc_b=jnp.zeros((K_CAT,), jnp.float32))
    coord = dict(conv_w=w(ks[2], (C_IN, C_HID), C_IN),
                 conv_b=jnp.zeros((C_HID,), jnp.float32),
                 fc_w=w(ks[3], (FLAT, K_COORD), FLAT),
                 fc_b=jnp.zeros((K_COORD,), jnp.float32))
    dec = dict(fc_w=w(ks[4], (Z_DIM, FLAT), Z_DIM),
               fc_b=jnp.zeros((FLAT,), jnp.float32),
               conv_w=w(ks[5], (C_HID, C_IN), C_HID),
               conv_b=jnp.zeros((C_IN,), jnp.float32))
    return dict(encoder=enc, coordinate_encoder=coord, decoder=dec)


# ------------------------- main -------------------------------------------------

if __name__ == "__main__":
    key = jax.random.PRNGKey(0)
    k_x, k_p, k_g = jax.random.split(key, 3)

    x = jax.random.normal(k_x, (B, C_IN, H, W), jnp.float32)        # NCHW
    params = init_params(k_p)
    # Gumbel noise sampled outside (F.gumbel_softmax samples it internally).
    gumbel_noise = jax.random.gumbel(k_g, (B, K_CAT), jnp.float32)

    model = CoordinateVAEModel(params)
    out = model(x, gumbel_noise)
    out = jax.block_until_ready(out)

    assert out.shape == (B, C_IN, H, W), out.shape
    assert out.dtype == jnp.float32
    assert bool(jnp.all(jnp.isfinite(out)))
    print("KERNEL_OK")
</pallas_src>

<mosaic_0001>
module attributes {stable_mosaic.version = 11 : i64} {
  func.func @_fused_cvae_kernel(%arg0: memref<4x512xf32, #tpu.memory_space<vmem>>, %arg1: memref<2x16xf32, #tpu.memory_space<vmem>>, %arg2: memref<8x4xf32, #tpu.memory_space<vmem>>, %arg3: memref<8x1xf32, #tpu.memory_space<vmem>>, %arg4: memref<512x16xf32, #tpu.memory_space<vmem>>, %arg5: memref<1x16xf32, #tpu.memory_space<vmem>>, %arg6: memref<8x4xf32, #tpu.memory_space<vmem>>, %arg7: memref<8x1xf32, #tpu.memory_space<vmem>>, %arg8: memref<512x16xf32, #tpu.memory_space<vmem>>, %arg9: memref<1x16xf32, #tpu.memory_space<vmem>>, %arg10: memref<32x512xf32, #tpu.memory_space<vmem>>, %arg11: memref<1x512xf32, #tpu.memory_space<vmem>>, %arg12: memref<4x8xf32, #tpu.memory_space<vmem>>, %arg13: memref<4x1xf32, #tpu.memory_space<vmem>>, %arg14: memref<4x512xf32, #tpu.memory_space<vmem>>) attributes {dimension_semantics = [], scalar_prefetch = 0 : i64, scratch_operands = 0 : i64, tpu.core_type = #tpu.core_type<tc>} {
    %c0 = arith.constant 0 : index
    %c0_0 = arith.constant 0 : index
    %0 = vector.load %arg0[%c0, %c0_0] : memref<4x512xf32, #tpu.memory_space<vmem>>, vector<4x512xf32>
    %c0_1 = arith.constant 0 : index
    %c0_2 = arith.constant 0 : index
    %1 = vector.load %arg2[%c0_1, %c0_2] : memref<8x4xf32, #tpu.memory_space<vmem>>, vector<8x4xf32>
    %cst = arith.constant dense<0.000000e+00> : vector<8x512xf32>
    %2 = tpu.matmul %1, %0, %cst {dimension_numbers = #tpu.dot_dimension_numbers<[1], [0], [0], [1], [0, 0, 1, 1], [], []>} : vector<8x4xf32>, vector<4x512xf32>, vector<8x512xf32> -> vector<8x512xf32>
    %c0_3 = arith.constant 0 : index
    %c0_4 = arith.constant 0 : index
    %3 = vector.load %arg3[%c0_3, %c0_4] : memref<8x1xf32, #tpu.memory_space<vmem>>, vector<8x1xf32>
    %4 = vector.broadcast %3 : vector<8x1xf32> to vector<8x512xf32>
    %5 = arith.addf %2, %4 : vector<8x512xf32>
    %cst_5 = arith.constant 0.000000e+00 : f32
    %6 = vector.broadcast %cst_5 : f32 to vector<8x512xf32>
    %7 = arith.maximumf %5, %6 : vector<8x512xf32>
    %c0_6 = arith.constant 0 : index
    %c0_7 = arith.constant 0 : index
    %8 = vector.load %arg6[%c0_6, %c0_7] : memref<8x4xf32, #tpu.memory_space<vmem>>, vector<8x4xf32>
    %cst_8 = arith.constant dense<0.000000e+00> : vector<8x512xf32>
    %9 = tpu.matmul %8, %0, %cst_8 {dimension_numbers = #tpu.dot_dimension_numbers<[1], [0], [0], [1], [0, 0, 1, 1], [], []>} : vector<8x4xf32>, vector<4x512xf32>, vector<8x512xf32> -> vector<8x512xf32>
    %c0_9 = arith.constant 0 : index
    %c0_10 = arith.constant 0 : index
    %10 = vector.load %arg7[%c0_9, %c0_10] : memref<8x1xf32, #tpu.memory_space<vmem>>, vector<8x1xf32>
    %11 = vector.broadcast %10 : vector<8x1xf32> to vector<8x512xf32>
    %12 = arith.addf %9, %11 : vector<8x512xf32>
    %cst_11 = arith.constant 0.000000e+00 : f32
    %13 = vector.broadcast %cst_11 : f32 to vector<8x512xf32>
    %14 = arith.maximumf %12, %13 : vector<8x512xf32>
    %15 = vector.extract_strided_slice %7 {offsets = [0, 0], sizes = [8, 128], strides = [1, 1]} : vector<8x512xf32> to vector<8x128xf32>
    %16 = vector.extract_strided_slice %7 {offsets = [0, 128], sizes = [8, 128], strides = [1, 1]} : vector<8x512xf32> to vector<8x128xf32>
    %17 = vector.extract_strided_slice %7 {offsets = [0, 256], sizes = [8, 128], strides = [1, 1]} : vector<8x512xf32> to vector<8x128xf32>
    %18 = vector.extract_strided_slice %7 {offsets = [0, 384], sizes = [8, 128], strides = [1, 1]} : vector<8x512xf32> to vector<8x128xf32>
    %19 = arith.maximumf %15, %16 : vector<8x128xf32>
    %20 = arith.maximumf %17, %18 : vector<8x128xf32>
    %21 = arith.maximumf %19, %20 : vector<8x128xf32>
    %22 = arith.cmpf oeq, %15, %21 : vector<8x128xf32>
    %23 = arith.cmpf oeq, %16, %21 : vector<8x128xf32>
    %24 = arith.cmpf oeq, %17, %21 : vector<8x128xf32>
    %c2_i32 = arith.constant 2 : i32
    %c3_i32 = arith.constant 3 : i32
    %25 = vector.broadcast %c2_i32 : i32 to vector<8x128xi32>
    %26 = vector.broadcast %c3_i32 : i32 to vector<8x128xi32>
    %27 = arith.select %24, %25, %26 : vector<8x128xi1>, vector<8x128xi32>
    %c1_i32 = arith.constant 1 : i32
    %28 = vector.broadcast %c1_i32 : i32 to vector<8x128xi32>
    %29 = arith.select %23, %28, %27 : vector<8x128xi1>, vector<8x128xi32>
    %c0_i32 = arith.constant 0 : i32
    %30 = vector.broadcast %c0_i32 : i32 to vector<8x128xi32>
    %31 = arith.select %22, %30, %29 : vector<8x128xi1>, vector<8x128xi32>
    %32 = vector.extract_strided_slice %14 {offsets = [0, 0], sizes = [8, 128], strides = [1, 1]} : vector<8x512xf32> to vector<8x128xf32>
    %33 = vector.extract_strided_slice %14 {offsets = [0, 128], sizes = [8, 128], strides = [1, 1]} : vector<8x512xf32> to vector<8x128xf32>
    %34 = vector.extract_strided_slice %14 {offsets = [0, 256], sizes = [8, 128], strides = [1, 1]} : vector<8x512xf32> to vector<8x128xf32>
    %35 = vector.extract_strided_slice %14 {offsets = [0, 384], sizes = [8, 128], strides = [1, 1]} : vector<8x512xf32> to vector<8x128xf32>
    %36 = arith.maximumf %32, %33 : vector<8x128xf32>
    %37 = arith.maximumf %34, %35 : vector<8x128xf32>
    %38 = arith.maximumf %36, %37 : vector<8x128xf32>
    %39 = vector.extract_strided_slice %21 {offsets = [0, 0], sizes = [1, 64], strides = [1, 1]} : vector<8x128xf32> to vector<1x64xf32>
    %40 = vector.extract_strided_slice %21 {offsets = [1, 0], sizes = [1, 64], strides = [1, 1]} : vector<8x128xf32> to vector<1x64xf32>
    %41 = vector.extract_strided_slice %21 {offsets = [2, 0], sizes = [1, 64], strides = [1, 1]} : vector<8x128xf32> to vector<1x64xf32>
    %42 = vector.extract_strided_slice %21 {offsets = [3, 0], sizes = [1, 64], strides = [1, 1]} : vector<8x128xf32> to vector<1x64xf32>
    %43 = vector.extract_strided_slice %21 {offsets = [4, 0], sizes = [1, 64], strides = [1, 1]} : vector<8x128xf32> to vector<1x64xf32>
    %44 = vector.extract_strided_slice %21 {offsets = [5, 0], sizes = [1, 64], strides = [1, 1]} : vector<8x128xf32> to vector<1x64xf32>
    %45 = vector.extract_strided_slice %21 {offsets = [6, 0], sizes = [1, 64], strides = [1, 1]} : vector<8x128xf32> to vector<1x64xf32>
    %46 = vector.extract_strided_slice %21 {offsets = [7, 0], sizes = [1, 64], strides = [1, 1]} : vector<8x128xf32> to vector<1x64xf32>
    %47 = tpu.concatenate %39, %40, %41, %42, %43, %44, %45, %46 in 1 : vector<1x64xf32>, vector<1x64xf32>, vector<1x64xf32>, vector<1x64xf32>, vector<1x64xf32>, vector<1x64xf32>, vector<1x64xf32>, vector<1x64xf32> -> vector<1x512xf32>
    %48 = vector.extract_strided_slice %21 {offsets = [0, 64], sizes = [1, 64], strides = [1, 1]} : vector<8x128xf32> to vector<1x64xf32>
    %49 = vector.extract_strided_slice %21 {offsets = [1, 64], sizes = [1, 64], strides = [1, 1]} : vector<8x128xf32> to vector<1x64xf32>
    %50 = vector.extract_strided_slice %21 {offsets = [2, 64], sizes = [1, 64], strides = [1, 1]} : vector<8x128xf32> to vector<1x64xf32>
    %51 = vector.extract_strided_slice %21 {offsets = [3, 64], sizes = [1, 64], strides = [1, 1]} : vector<8x128xf32> to vector<1x64xf32>
    %52 = vector.extract_strided_slice %21 {offsets = [4, 64], sizes = [1, 64], strides = [1, 1]} : vector<8x128xf32> to vector<1x64xf32>
    %53 = vector.extract_strided_slice %21 {offsets = [5, 64], sizes = [1, 64], strides = [1, 1]} : vector<8x128xf32> to vector<1x64xf32>
    %54 = vector.extract_strided_slice %21 {offsets = [6, 64], sizes = [1, 64], strides = [1, 1]} : vector<8x128xf32> to vector<1x64xf32>
    %55 = vector.extract_strided_slice %21 {offsets = [7, 64], sizes = [1, 64], strides = [1, 1]} : vector<8x128xf32> to vector<1x64xf32>
    %56 = tpu.concatenate %48, %49, %50, %51, %52, %53, %54, %55 in 1 : vector<1x64xf32>, vector<1x64xf32>, vector<1x64xf32>, vector<1x64xf32>, vector<1x64xf32>, vector<1x64xf32>, vector<1x64xf32>, vector<1x64xf32> -> vector<1x512xf32>
    %57 = tpu.concatenate %47, %56 in 0 : vector<1x512xf32>, vector<1x512xf32> -> vector<2x512xf32>
    %c0_12 = arith.constant 0 : index
    %c0_13 = arith.constant 0 : index
    %58 = vector.load %arg4[%c0_12, %c0_13] : memref<512x16xf32, #tpu.memory_space<vmem>>, vector<512x16xf32>
    %cst_14 = arith.constant dense<0.000000e+00> : vector<2x16xf32>
    %59 = tpu.matmul %57, %58, %cst_14 {dimension_numbers = #tpu.dot_dimension_numbers<[1], [0], [0], [1], [0, 0, 1, 1], [], []>} : vector<2x512xf32>, vector<512x16xf32>, vector<2x16xf32> -> vector<2x16xf32>
    %c0_15 = arith.constant 0 : index
    %c0_16 = arith.constant 0 : index
    %60 = vector.load %arg5[%c0_15, %c0_16] : memref<1x16xf32, #tpu.memory_space<vmem>>, vector<1x16xf32>
    %61 = vector.broadcast %60 : vector<1x16xf32> to vector<2x16xf32>
    %62 = arith.addf %59, %61 : vector<2x16xf32>
    %63 = vector.extract_strided_slice %38 {offsets = [0, 0], sizes = [1, 64], strides = [1, 1]} : vector<8x128xf32> to vector<1x64xf32>
    %64 = vector.extract_strided_slice %38 {offsets = [1, 0], sizes = [1, 64], strides = [1, 1]} : vector<8x128xf32> to vector<1x64xf32>
    %65 = vector.extract_strided_slice %38 {offsets = [2, 0], sizes = [1, 64], strides = [1, 1]} : vector<8x128xf32> to vector<1x64xf32>
    %66 = vector.extract_strided_slice %38 {offsets = [3, 0], sizes = [1, 64], strides = [1, 1]} : vector<8x128xf32> to vector<1x64xf32>
    %67 = vector.extract_strided_slice %38 {offsets = [4, 0], sizes = [1, 64], strides = [1, 1]} : vector<8x128xf32> to vector<1x64xf32>
    %68 = vector.extract_strided_slice %38 {offsets = [5, 0], sizes = [1, 64], strides = [1, 1]} : vector<8x128xf32> to vector<1x64xf32>
    %69 = vector.extract_strided_slice %38 {offsets = [6, 0], sizes = [1, 64], strides = [1, 1]} : vector<8x128xf32> to vector<1x64xf32>
    %70 = vector.extract_strided_slice %38 {offsets = [7, 0], sizes = [1, 64], strides = [1, 1]} : vector<8x128xf32> to vector<1x64xf32>
    %71 = tpu.concatenate %63, %64, %65, %66, %67, %68, %69, %70 in 1 : vector<1x64xf32>, vector<1x64xf32>, vector<1x64xf32>, vector<1x64xf32>, vector<1x64xf32>, vector<1x64xf32>, vector<1x64xf32>, vector<1x64xf32> -> vector<1x512xf32>
    %72 = vector.extract_strided_slice %38 {offsets = [0, 64], sizes = [1, 64], strides = [1, 1]} : vector<8x128xf32> to vector<1x64xf32>
    %73 = vector.extract_strided_slice %38 {offsets = [1, 64], sizes = [1, 64], strides = [1, 1]} : vector<8x128xf32> to vector<1x64xf32>
    %74 = vector.extract_strided_slice %38 {offsets = [2, 64], sizes = [1, 64], strides = [1, 1]} : vector<8x128xf32> to vector<1x64xf32>
    %75 = vector.extract_strided_slice %38 {offsets = [3, 64], sizes = [1, 64], strides = [1, 1]} : vector<8x128xf32> to vector<1x64xf32>
    %76 = vector.extract_strided_slice %38 {offsets = [4, 64], sizes = [1, 64], strides = [1, 1]} : vector<8x128xf32> to vector<1x64xf32>
    %77 = vector.extract_strided_slice %38 {offsets = [5, 64], sizes = [1, 64], strides = [1, 1]} : vector<8x128xf32> to vector<1x64xf32>
    %78 = vector.extract_strided_slice %38 {offsets = [6, 64], sizes = [1, 64], strides = [1, 1]} : vector<8x128xf32> to vector<1x64xf32>
    %79 = vector.extract_strided_slice %38 {offsets = [7, 64], sizes = [1, 64], strides = [1, 1]} : vector<8x128xf32> to vector<1x64xf32>
    %80 = tpu.concatenate %72, %73, %74, %75, %76, %77, %78, %79 in 1 : vector<1x64xf32>, vector<1x64xf32>, vector<1x64xf32>, vector<1x64xf32>, vector<1x64xf32>, vector<1x64xf32>, vector<1x64xf32>, vector<1x64xf32> -> vector<1x512xf32>
    %81 = tpu.concatenate %71, %80 in 0 : vector<1x512xf32>, vector<1x512xf32> -> vector<2x512xf32>
    %c0_17 = arith.constant 0 : index
    %c0_18 = arith.constant 0 : index
    %82 = vector.load %arg8[%c0_17, %c0_18] : memref<512x16xf32, #tpu.memory_space<vmem>>, vector<512x16xf32>
    %cst_19 = arith.constant dense<0.000000e+00> : vector<2x16xf32>
    %83 = tpu.matmul %81, %82, %cst_19 {dimension_numbers = #tpu.dot_dimension_numbers<[1], [0], [0], [1], [0, 0, 1, 1], [], []>} : vector<2x512xf32>, vector<512x16xf32>, vector<2x16xf32> -> vector<2x16xf32>
    %c0_20 = arith.constant 0 : index
    %c0_21 = arith.constant 0 : index
    %84 = vector.load %arg9[%c0_20, %c0_21] : memref<1x16xf32, #tpu.memory_space<vmem>>, vector<1x16xf32>
    %85 = vector.broadcast %84 : vector<1x16xf32> to vector<2x16xf32>
    %86 = arith.addf %83, %85 : vector<2x16xf32>
    %c0_22 = arith.constant 0 : index
    %c0_23 = arith.constant 0 : index
    %87 = vector.load %arg1[%c0_22, %c0_23] : memref<2x16xf32, #tpu.memory_space<vmem>>, vector<2x16xf32>
    %88 = arith.addf %62, %87 : vector<2x16xf32>
    %cst_24 = arith.constant 5.000000e-01 : f32
    %89 = vector.broadcast %cst_24 : f32 to vector<2x16xf32>
    %90 = arith.mulf %88, %89 : vector<2x16xf32>
    %cst_25 = arith.constant dense<0xFF800000> : vector<2xf32>
    %91 = vector.multi_reduction <maximumf>, %90, %cst_25 [1] : vector<2x16xf32> to vector<2xf32>
    %92 = vector.shape_cast %91 : vector<2xf32> to vector<2x1xf32>
    %93 = vector.broadcast %92 : vector<2x1xf32> to vector<2x16xf32>
    %94 = arith.subf %90, %93 : vector<2x16xf32>
    %95 = math.exp %94 : vector<2x16xf32>
    %cst_26 = arith.constant dense<0.000000e+00> : vector<2xf32>
    %96 = vector.multi_reduction <add>, %95, %cst_26 [1] : vector<2x16xf32> to vector<2xf32>
    %97 = vector.shape_cast %96 : vector<2xf32> to vector<2x1xf32>
    %98 = vector.broadcast %97 : vector<2x1xf32> to vector<2x16xf32>
    %99 = arith.divf %95, %98 : vector<2x16xf32>
    %100 = tpu.iota {dimensions = array<i32: 1>} : vector<2x16xi32>
    %cst_27 = arith.constant dense<0xFF800000> : vector<2xf32>
    %101 = vector.multi_reduction <maximumf>, %99, %cst_27 [1] : vector<2x16xf32> to vector<2xf32>
    %102 = vector.shape_cast %101 : vector<2xf32> to vector<2x1xf32>
    %103 = vector.broadcast %102 : vector<2x1xf32> to vector<2x16xf32>
    %104 = arith.cmpf oeq, %99, %103 : vector<2x16xf32>
    %c16_i32 = arith.constant 16 : i32
    %105 = vector.broadcast %c16_i32 : i32 to vector<2x16xi32>
    %106 = arith.select %104, %100, %105 : vector<2x16xi1>, vector<2x16xi32>
    %cst_28 = arith.constant dense<2147483647> : vector<2xi32>
    %107 = vector.multi_reduction <minsi>, %106, %cst_28 [1] : vector<2x16xi32> to vector<2xi32>
    %108 = vector.shape_cast %107 : vector<2xi32> to vector<2x1xi32>
    %109 = vector.broadcast %108 : vector<2x1xi32> to vector<2x16xi32>
    %110 = arith.cmpi eq, %100, %109 : vector<2x16xi32>
    %cst_29 = arith.constant 1.000000e+00 : f32
    %cst_30 = arith.constant 0.000000e+00 : f32
    %111 = vector.broadcast %cst_29 : f32 to vector<2x16xf32>
    %112 = vector.broadcast %cst_30 : f32 to vector<2x16xf32>
    %113 = arith.select %110, %111, %112 : vector<2x16xi1>, vector<2x16xf32>
    %114 = tpu.concatenate %113, %86 in 1 : vector<2x16xf32>, vector<2x16xf32> -> vector<2x32xf32>
    %c0_31 = arith.constant 0 : index
    %c0_32 = arith.constant 0 : index
    %115 = vector.load %arg10[%c0_31, %c0_32] : memref<32x512xf32, #tpu.memory_space<vmem>>, vector<32x512xf32>
    %cst_33 = arith.constant dense<0.000000e+00> : vector<2x512xf32>
    %116 = tpu.matmul %114, %115, %cst_33 {dimension_numbers = #tpu.dot_dimension_numbers<[1], [0], [0], [1], [0, 0, 1, 1], [], []>} : vector<2x32xf32>, vector<32x512xf32>, vector<2x512xf32> -> vector<2x512xf32>
    %c0_34 = arith.constant 0 : index
    %c0_35 = arith.constant 0 : index
    %117 = vector.load %arg11[%c0_34, %c0_35] : memref<1x512xf32, #tpu.memory_space<vmem>>, vector<1x512xf32>
    %118 = vector.broadcast %117 : vector<1x512xf32> to vector<2x512xf32>
    %119 = arith.addf %116, %118 : vector<2x512xf32>
    %cst_36 = arith.constant 0.000000e+00 : f32
    %120 = vector.broadcast %cst_36 : f32 to vector<2x512xf32>
    %121 = arith.maximumf %119, %120 : vector<2x512xf32>
    %122 = vector.extract_strided_slice %121 {offsets = [0, 0], sizes = [2, 64], strides = [1, 1]} : vector<2x512xf32> to vector<2x64xf32>
    %123 = vector.extract_strided_slice %122 {offsets = [0, 0], sizes = [1, 64], strides = [1, 1]} : vector<2x64xf32> to vector<1x64xf32>
    %124 = vector.extract_strided_slice %122 {offsets = [1, 0], sizes = [1, 64], strides = [1, 1]} : vector<2x64xf32> to vector<1x64xf32>
    %125 = tpu.concatenate %123, %124 in 1 : vector<1x64xf32>, vector<1x64xf32> -> vector<1x128xf32>
    %126 = vector.extract_strided_slice %121 {offsets = [0, 64], sizes = [2, 64], strides = [1, 1]} : vector<2x512xf32> to vector<2x64xf32>
    %127 = vector.extract_strided_slice %126 {offsets = [0, 0], sizes = [1, 64], strides = [1, 1]} : vector<2x64xf32> to vector<1x64xf32>
    %128 = vector.extract_strided_slice %126 {offsets = [1, 0], sizes = [1, 64], strides = [1, 1]} : vector<2x64xf32> to vector<1x64xf32>
    %129 = tpu.concatenate %127, %128 in 1 : vector<1x64xf32>, vector<1x64xf32> -> vector<1x128xf32>
    %130 = vector.extract_strided_slice %121 {offsets = [0, 128], sizes = [2, 64], strides = [1, 1]} : vector<2x512xf32> to vector<2x64xf32>
    %131 = vector.extract_strided_slice %130 {offsets = [0, 0], sizes = [1, 64], strides = [1, 1]} : vector<2x64xf32> to vector<1x64xf32>
    %132 = vector.extract_strided_slice %130 {offsets = [1, 0], sizes = [1, 64], strides = [1, 1]} : vector<2x64xf32> to vector<1x64xf32>
    %133 = tpu.concatenate %131, %132 in 1 : vector<1x64xf32>, vector<1x64xf32> -> vector<1x128xf32>
    %134 = vector.extract_strided_slice %121 {offsets = [0, 192], sizes = [2, 64], strides = [1, 1]} : vector<2x512xf32> to vector<2x64xf32>
    %135 = vector.extract_strided_slice %134 {offsets = [0, 0], sizes = [1, 64], strides = [1, 1]} : vector<2x64xf32> to vector<1x64xf32>
    %136 = vector.extract_strided_slice %134 {offsets = [1, 0], sizes = [1, 64], strides = [1, 1]} : vector<2x64xf32> to vector<1x64xf32>
    %137 = tpu.concatenate %135, %136 in 1 : vector<1x64xf32>, vector<1x64xf32> -> vector<1x128xf32>
    %138 = vector.extract_strided_slice %121 {offsets = [0, 256], sizes = [2, 64], strides = [1, 1]} : vector<2x512xf32> to vector<2x64xf32>
    %139 = vector.extract_strided_slice %138 {offsets = [0, 0], sizes = [1, 64], strides = [1, 1]} : vector<2x64xf32> to vector<1x64xf32>
    %140 = vector.extract_strided_slice %138 {offsets = [1, 0], sizes = [1, 64], strides = [1, 1]} : vector<2x64xf32> to vector<1x64xf32>
    %141 = tpu.concatenate %139, %140 in 1 : vector<1x64xf32>, vector<1x64xf32> -> vector<1x128xf32>
    %142 = vector.extract_strided_slice %121 {offsets = [0, 320], sizes = [2, 64], strides = [1, 1]} : vector<2x512xf32> to vector<2x64xf32>
    %143 = vector.extract_strided_slice %142 {offsets = [0, 0], sizes = [1, 64], strides = [1, 1]} : vector<2x64xf32> to vector<1x64xf32>
    %144 = vector.extract_strided_slice %142 {offsets = [1, 0], sizes = [1, 64], strides = [1, 1]} : vector<2x64xf32> to vector<1x64xf32>
    %145 = tpu.concatenate %143, %144 in 1 : vector<1x64xf32>, vector<1x64xf32> -> vector<1x128xf32>
    %146 = vector.extract_strided_slice %121 {offsets = [0, 384], sizes = [2, 64], strides = [1, 1]} : vector<2x512xf32> to vector<2x64xf32>
    %147 = vector.extract_strided_slice %146 {offsets = [0, 0], sizes = [1, 64], strides = [1, 1]} : vector<2x64xf32> to vector<1x64xf32>
    %148 = vector.extract_strided_slice %146 {offsets = [1, 0], sizes = [1, 64], strides = [1, 1]} : vector<2x64xf32> to vector<1x64xf32>
    %149 = tpu.concatenate %147, %148 in 1 : vector<1x64xf32>, vector<1x64xf32> -> vector<1x128xf32>
    %150 = vector.extract_strided_slice %121 {offsets = [0, 448], sizes = [2, 64], strides = [1, 1]} : vector<2x512xf32> to vector<2x64xf32>
    %151 = vector.extract_strided_slice %150 {offsets = [0, 0], sizes = [1, 64], strides = [1, 1]} : vector<2x64xf32> to vector<1x64xf32>
    %152 = vector.extract_strided_slice %150 {offsets = [1, 0], sizes = [1, 64], strides = [1, 1]} : vector<2x64xf32> to vector<1x64xf32>
    %153 = tpu.concatenate %151, %152 in 1 : vector<1x64xf32>, vector<1x64xf32> -> vector<1x128xf32>
    %154 = tpu.concatenate %125, %129, %133, %137, %141, %145, %149, %153 in 0 : vector<1x128xf32>, vector<1x128xf32>, vector<1x128xf32>, vector<1x128xf32>, vector<1x128xf32>, vector<1x128xf32>, vector<1x128xf32>, vector<1x128xf32> -> vector<8x128xf32>
    %c0_i32_37 = arith.constant 0 : i32
    %155 = vector.broadcast %c0_i32_37 : i32 to vector<8x128xi32>
    %156 = arith.cmpi eq, %31, %155 : vector<8x128xi32>
    %cst_38 = arith.constant 0.000000e+00 : f32
    %157 = vector.broadcast %cst_38 : f32 to vector<8x128xf32>
    %158 = arith.select %156, %154, %157 : vector<8x128xi1>, vector<8x128xf32>
    %c1_i32_39 = arith.constant 1 : i32
    %159 = vector.broadcast %c1_i32_39 : i32 to vector<8x128xi32>
    %160 = arith.cmpi eq, %31, %159 : vector<8x128xi32>
    %cst_40 = arith.constant 0.000000e+00 : f32
    %161 = vector.broadcast %cst_40 : f32 to vector<8x128xf32>
    %162 = arith.select %160, %154, %161 : vector<8x128xi1>, vector<8x128xf32>
    %c2_i32_41 = arith.constant 2 : i32
    %163 = vector.broadcast %c2_i32_41 : i32 to vector<8x128xi32>
    %164 = arith.cmpi eq, %31, %163 : vector<8x128xi32>
    %cst_42 = arith.constant 0.000000e+00 : f32
    %165 = vector.broadcast %cst_42 : f32 to vector<8x128xf32>
    %166 = arith.select %164, %154, %165 : vector<8x128xi1>, vector<8x128xf32>
    %c3_i32_43 = arith.constant 3 : i32
    %167 = vector.broadcast %c3_i32_43 : i32 to vector<8x128xi32>
    %168 = arith.cmpi eq, %31, %167 : vector<8x128xi32>
    %cst_44 = arith.constant 0.000000e+00 : f32
    %169 = vector.broadcast %cst_44 : f32 to vector<8x128xf32>
    %170 = arith.select %168, %154, %169 : vector<8x128xi1>, vector<8x128xf32>
    %171 = tpu.concatenate %158, %162, %166, %170 in 1 : vector<8x128xf32>, vector<8x128xf32>, vector<8x128xf32>, vector<8x128xf32> -> vector<8x512xf32>
    %c0_45 = arith.constant 0 : index
    %c0_46 = arith.constant 0 : index
    %172 = vector.load %arg12[%c0_45, %c0_46] : memref<4x8xf32, #tpu.memory_space<vmem>>, vector<4x8xf32>
    %cst_47 = arith.constant dense<0.000000e+00> : vector<4x512xf32>
    %173 = tpu.matmul %172, %171, %cst_47 {dimension_numbers = #tpu.dot_dimension_numbers<[1], [0], [0], [1], [0, 0, 1, 1], [], []>} : vector<4x8xf32>, vector<8x512xf32>, vector<4x512xf32> -> vector<4x512xf32>
    %c0_48 = arith.constant 0 : index
    %c0_49 = arith.constant 0 : index
    %174 = vector.load %arg13[%c0_48, %c0_49] : memref<4x1xf32, #tpu.memory_space<vmem>>, vector<4x1xf32>
    %175 = vector.broadcast %174 : vector<4x1xf32> to vector<4x512xf32>
    %176 = arith.addf %173, %175 : vector<4x512xf32>
    %c0_50 = arith.constant 0 : index
    %c0_51 = arith.constant 0 : index
    %177 = vector.load %arg14[%c0_50, %c0_51] : memref<4x512xf32, #tpu.memory_space<vmem>>, vector<4x512xf32>
    tpu.vector_store %arg14[%c0_50, %c0_51], %176 {strides = array<i32>} : memref<4x512xf32, #tpu.memory_space<vmem>>, vector<4x512xf32>,
    return
  }
}

</mosaic_0001>

<llo_original>
// kernel: tpu_custom_call.1
$region0: #{tpu_custom_call.1}
  #allocation0 [shape = 'u32[]', space=smem, size = 0x4, offset = 0x4, fixed_abs, tag = 'smem constant byte address 0x4 - core index']
  #allocation1 [shape = 'u32[72,128]{1,0:T(1,128)}', space=vmem, size = 0x9000, scoped, tag = 'internal scratch']
  %s0 = inlined_call_operand.vmem [shape: f32[4,512], index: 0, kind: input, shape index: {}]
  %s1 = inlined_call_operand.vmem [shape: f32[2,16], index: 1, kind: input, shape index: {}]
  %s2 = inlined_call_operand.vmem [shape: f32[8,4], index: 2, kind: input, shape index: {}]
  %s3 = inlined_call_operand.vmem [shape: f32[8,1], index: 3, kind: input, shape index: {}]
  %s4 = inlined_call_operand.vmem [shape: f32[512,16], index: 4, kind: input, shape index: {}]
  %s5 = inlined_call_operand.vmem [shape: f32[1,16], index: 5, kind: input, shape index: {}]
  %s6 = inlined_call_operand.vmem [shape: f32[8,4], index: 6, kind: input, shape index: {}]
  %s7 = inlined_call_operand.vmem [shape: f32[8,1], index: 7, kind: input, shape index: {}]
  %s8 = inlined_call_operand.vmem [shape: f32[512,16], index: 8, kind: input, shape index: {}]
  %s9 = inlined_call_operand.vmem [shape: f32[1,16], index: 9, kind: input, shape index: {}]
  %s10 = inlined_call_operand.vmem [shape: f32[32,512], index: 10, kind: input, shape index: {}]
  %s11 = inlined_call_operand.vmem [shape: f32[1,512], index: 11, kind: input, shape index: {}]
  %s12 = inlined_call_operand.vmem [shape: f32[4,8], index: 12, kind: input, shape index: {}]
  %s13 = inlined_call_operand.vmem [shape: f32[4,1], index: 13, kind: input, shape index: {}]
  %s14 = inlined_call_operand.hbm [shape: f32[4,512], index: 14, kind: output, shape index: {}]
  %s15 = sld [smem:[#allocation0]]
  $region66: #{tpu_custom_call.1} parent=0
    _
  %s17 = ssub.s32 1, %s15
  %s18 = scalar_select 0, %s17, %s15
  $region1: #{tpu_custom_call.1} parent=0
    #allocation2 [shape = 'u8[8192]{0}', space=vmem, size = 0x2000, scoped, tag = 'output window, operand 0, single buffered']
    #allocation3 [shape = 's32[1]{0}', space=sflag, size = 0x4, scoped, tag = 'scoped memory for tpu_custom_call.1']
    %19 = vsyncpa [#allocation3], 0
    // Predicated region
    $region2: #{tpu_custom_call.1} parent=1 // pred_check
      _
    $region3: #{tpu_custom_call.1} parent=1 // pred_check_branch
      %21 = sbr.rel (0) target = $region5
    $region4: #{tpu_custom_call.1} parent=1 // pred_region
      _
    $region5: #{tpu_custom_call.1} parent=1 // pred_fallthru
      _
    // Predicated region
    $region6: #{tpu_custom_call.1} parent=1 // pred_check
      _
    $region7: #{tpu_custom_call.1} parent=1 // pred_check_branch
      %23 = sbr.rel (0) target = $region9
    $region8: #{tpu_custom_call.1} parent=1 // pred_region
      _
    $region9: #{tpu_custom_call.1} parent=1 // pred_fallthru
      _
    // Predicated region
    $region10: #{tpu_custom_call.1} parent=1 // pred_check
      _
    $region11: #{tpu_custom_call.1} parent=1 // pred_check_branch
      %25 = sbr.rel (0) target = $region13
    $region12: #{tpu_custom_call.1} parent=1 // pred_region
      _
    $region13: #{tpu_custom_call.1} parent=1 // pred_fallthru
      _
    // Predicated region
    $region14: #{tpu_custom_call.1} parent=1 // pred_check
      _
    $region15: #{tpu_custom_call.1} parent=1 // pred_check_branch
      %27 = sbr.rel (0) target = $region17
    $region16: #{tpu_custom_call.1} parent=1 // pred_region
      _
    $region17: #{tpu_custom_call.1} parent=1 // pred_fallthru
      _
    // Predicated region
    $region18: #{tpu_custom_call.1} parent=1 // pred_check
      _
    $region19: #{tpu_custom_call.1} parent=1 // pred_check_branch
      %29 = sbr.rel (0) target = $region21
    $region20: #{tpu_custom_call.1} parent=1 // pred_region
      _
    $region21: #{tpu_custom_call.1} parent=1 // pred_fallthru
      _
    // Predicated region
    $region22: #{tpu_custom_call.1} parent=1 // pred_check
      _
    $region23: #{tpu_custom_call.1} parent=1 // pred_check_branch
      %31 = sbr.rel (0) target = $region25
    $region24: #{tpu_custom_call.1} parent=1 // pred_region
      _
    $region25: #{tpu_custom_call.1} parent=1 // pred_fallthru
      _
    // Predicated region
    $region26: #{tpu_custom_call.1} parent=1 // pred_check
      _
    $region27: #{tpu_custom_call.1} parent=1 // pred_check_branch
      %33 = sbr.rel (0) target = $region29
    $region28: #{tpu_custom_call.1} parent=1 // pred_region
      _
    $region29: #{tpu_custom_call.1} parent=1 // pred_fallthru
      _
    // Predicated region
    $region30: #{tpu_custom_call.1} parent=1 // pred_check
      _
    $region31: #{tpu_custom_call.1} parent=1 // pred_check_branch
      %35 = sbr.rel (0) target = $region33
    $region32: #{tpu_custom_call.1} parent=1 // pred_region
      _
    $region33: #{tpu_custom_call.1} parent=1 // pred_fallthru
      _
    // Predicated region
    $region34: #{tpu_custom_call.1} parent=1 // pred_check
      _
    $region35: #{tpu_custom_call.1} parent=1 // pred_check_branch
      %37 = sbr.rel (0) target = $region37
    $region36: #{tpu_custom_call.1} parent=1 // pred_region
      _
    $region37: #{tpu_custom_call.1} parent=1 // pred_fallthru
      _
    // Predicated region
    $region38: #{tpu_custom_call.1} parent=1 // pred_check
      _
    $region39: #{tpu_custom_call.1} parent=1 // pred_check_branch
      %39 = sbr.rel (0) target = $region41
    $region40: #{tpu_custom_call.1} parent=1 // pred_region
      _
    $region41: #{tpu_custom_call.1} parent=1 // pred_fallthru
      _
    // Predicated region
    $region42: #{tpu_custom_call.1} parent=1 // pred_check
      _
    $region43: #{tpu_custom_call.1} parent=1 // pred_check_branch
      %41 = sbr.rel (0) target = $region45
    $region44: #{tpu_custom_call.1} parent=1 // pred_region
      _
    $region45: #{tpu_custom_call.1} parent=1 // pred_fallthru
      _
    // Predicated region
    $region46: #{tpu_custom_call.1} parent=1 // pred_check
      _
    $region47: #{tpu_custom_call.1} parent=1 // pred_check_branch
      %43 = sbr.rel (0) target = $region49
    $region48: #{tpu_custom_call.1} parent=1 // pred_region
      _
    $region49: #{tpu_custom_call.1} parent=1 // pred_fallthru
      _
    // Predicated region
    $region50: #{tpu_custom_call.1} parent=1 // pred_check
      _
    $region51: #{tpu_custom_call.1} parent=1 // pred_check_branch
      %45 = sbr.rel (0) target = $region53
    $region52: #{tpu_custom_call.1} parent=1 // pred_region
      _
    $region53: #{tpu_custom_call.1} parent=1 // pred_fallthru
      _
    // Predicated region
    $region54: #{tpu_custom_call.1} parent=1 // pred_check
      _
    $region55: #{tpu_custom_call.1} parent=1 // pred_check_branch
      %47 = sbr.rel (0) target = $region57
    $region56: #{tpu_custom_call.1} parent=1 // pred_region
      _
    $region57: #{tpu_custom_call.1} parent=1 // pred_fallthru
      _
    %v48 = vld [vmem:[%s0] sm:$0xff]
    %v49 = vld [vmem:[%s0 + $0x8] sm:$0xff]
    %v50 = vld [vmem:[%s2] sm:$0xff]
    %v51 = vld [vmem:[%s3] sm:$0xff]
    %53 = vset.pattern.permute.xlu0 0
    %54 = vperm.xlu0 %53, %v51
    %v55 = vpop.permute.xlu0 %54
    %59 = vst [vmem:[#allocation1] ss:$2 sm:$0xff] %v48
    %s60 = scalar_lea.vmem [#allocation1], 16
    %61 = vst [vmem:[%s60] ss:$2 sm:$0xff] %v49
    %v62 = vld.sshfl [vmem:[#allocation1] sm:$0xff pattern:$0x75316420]
    %v63 = vld.sshfl [vmem:[#allocation1 + $0x8] sm:$0xff pattern:$0x75316420]
    %v64 = vld.sshfl [vmem:[#allocation1 + $0x10] sm:$0xff pattern:$0x75316420]
    %v65 = vld.sshfl [vmem:[#allocation1 + $0x18] sm:$0xff pattern:$0x75316420]
    %vm66 = vcmask 31744
    %v68 = vsel %vm66, %v50, 0
    %vm70 = vcmask 1043456
    %v71 = vsel %vm70, %v62, 0
    %v73 = vsel %vm70, %v63, 0
    %v75 = vsel %vm70, %v64, 0
    %v77 = vsel %vm70, %v65, 0
    %79 = vmatpush.msra.mxu0 0.0
    %80 = vmatpush.msra.mxu0 0.0
    %81 = vmatpush.msra.mxu0 0.0
    %82 = vmatpush.msra.mxu0 0.0
    %83 = vmatpush.msra.mxu0 0.0
    %84 = vmatpush.msra.mxu0 0.0
    %85 = vmatpush.msra.mxu0 0.0
    %86 = vmatpush.msra.mxu0 0.0
    %87 = vmatpush.msra.mxu0 0.0
    %88 = vmatpush.msra.mxu0 0.0
    %89 = vmatpush.msra.mxu0 0.0
    %90 = vmatpush.msra.mxu0 0.0
    %91 = vmatpush.msra.mxu0 0.0
    %92 = vmatpush.msra.mxu0 0.0
    %93 = vmatpush.msra.mxu0 0.0
    %94 = vmatpush.msra.mxu0 %v71
    %95 = vmatmul.f32.gmra.mxu0 %v68
    %v96 = vpop.f32.mrf.mxu0
    %v97 = vadd.f32 %v55, %v96
    %98 = vdwg.mxu0
    %99 = vmatpush.msra.mxu0 0.0
    %100 = vmatpush.msra.mxu0 0.0
    %101 = vmatpush.msra.mxu0 0.0
    %102 = vmatpush.msra.mxu0 0.0
    %103 = vmatpush.msra.mxu0 0.0
    %104 = vmatpush.msra.mxu0 0.0
    %105 = vmatpush.msra.mxu0 0.0
    %106 = vmatpush.msra.mxu0 0.0
    %107 = vmatpush.msra.mxu0 0.0
    %108 = vmatpush.msra.mxu0 0.0
    %109 = vmatpush.msra.mxu0 0.0
    %110 = vmatpush.msra.mxu0 0.0
    %111 = vmatpush.msra.mxu0 0.0
    %112 = vmatpush.msra.mxu0 0.0
    %113 = vmatpush.msra.mxu0 0.0
    %114 = vmatpush.msra.mxu0 %v73
    %115 = vmatmul.f32.gmra.mxu0 %v68
    %v116 = vpop.f32.mrf.mxu0
    %v117 = vadd.f32 %v55, %v116
    %118 = vdwg.mxu0
    %119 = vmatpush.msra.mxu0 0.0
    %120 = vmatpush.msra.mxu0 0.0
    %121 = vmatpush.msra.mxu0 0.0
    %122 = vmatpush.msra.mxu0 0.0
    %123 = vmatpush.msra.mxu0 0.0
    %124 = vmatpush.msra.mxu0 0.0
    %125 = vmatpush.msra.mxu0 0.0
    %126 = vmatpush.msra.mxu0 0.0
    %127 = vmatpush.msra.mxu0 0.0
    %128 = vmatpush.msra.mxu0 0.0
    %129 = vmatpush.msra.mxu0 0.0
    %130 = vmatpush.msra.mxu0 0.0
    %131 = vmatpush.msra.mxu0 0.0
    %132 = vmatpush.msra.mxu0 0.0
    %133 = vmatpush.msra.mxu0 0.0
    %134 = vmatpush.msra.mxu0 %v75
    %135 = vmatmul.f32.gmra.mxu0 %v68
    %v136 = vpop.f32.mrf.mxu0
    %v137 = vadd.f32 %v55, %v136
    %138 = vdwg.mxu0
    %139 = vmatpush.msra.mxu0 0.0
    %140 = vmatpush.msra.mxu0 0.0
    %141 = vmatpush.msra.mxu0 0.0
    %142 = vmatpush.msra.mxu0 0.0
    %143 = vmatpush.msra.mxu0 0.0
    %144 = vmatpush.msra.mxu0 0.0
    %145 = vmatpush.msra.mxu0 0.0
    %146 = vmatpush.msra.mxu0 0.0
    %147 = vmatpush.msra.mxu0 0.0
    %148 = vmatpush.msra.mxu0 0.0
    %149 = vmatpush.msra.mxu0 0.0
    %150 = vmatpush.msra.mxu0 0.0
    %151 = vmatpush.msra.mxu0 0.0
    %152 = vmatpush.msra.mxu0 0.0
    %153 = vmatpush.msra.mxu0 0.0
    %154 = vmatpush.msra.mxu0 %v77
    %155 = vmatmul.f32.gmra.mxu0 %v68
    %v156 = vpop.f32.mrf.mxu0
    %v157 = vadd.f32 %v55, %v156
    %158 = vdwg.mxu0
    %v159 = vmax.f32 %v97, 0.0
    %v160 = vmax.f32 %v117, 0.0
    %v161 = vmax.f32 %v137, 0.0
    %v162 = vmax.f32 %v157, 0.0
    %v163 = vld [vmem:[%s6] sm:$0xff]
    %v164 = vld [vmem:[%s7] sm:$0xff]
    %166 = vset.pattern.permute.xlu0 0
    %167 = vperm.xlu0 %166, %v164
    %v168 = vpop.permute.xlu0 %167
    %170 = vst [vmem:[#allocation1] ss:$2 sm:$0xff] %v48
    %s171 = scalar_lea.vmem [#allocation1], 16
    %172 = vst [vmem:[%s171] ss:$2 sm:$0xff] %v49
    %v173 = vld.sshfl [vmem:[#allocation1] sm:$0xff pattern:$0x75316420]
    %v174 = vld.sshfl [vmem:[#allocation1 + $0x8] sm:$0xff pattern:$0x75316420]
    %v175 = vld.sshfl [vmem:[#allocation1 + $0x10] sm:$0xff pattern:$0x75316420]
    %v176 = vld.sshfl [vmem:[#allocation1 + $0x18] sm:$0xff pattern:$0x75316420]
    %v178 = vsel %vm66, %v163, 0
    %v180 = vsel %vm70, %v173, 0
    %v182 = vsel %vm70, %v174, 0
    %v184 = vsel %vm70, %v175, 0
    %v186 = vsel %vm70, %v176, 0
    %188 = vmatpush.msra.mxu0 0.0
    %189 = vmatpush.msra.mxu0 0.0
    %190 = vmatpush.msra.mxu0 0.0
    %191 = vmatpush.msra.mxu0 0.0
    %192 = vmatpush.msra.mxu0 0.0
    %193 = vmatpush.msra.mxu0 0.0
    %194 = vmatpush.msra.mxu0 0.0
    %195 = vmatpush.msra.mxu0 0.0
    %196 = vmatpush.msra.mxu0 0.0
    %197 = vmatpush.msra.mxu0 0.0
    %198 = vmatpush.msra.mxu0 0.0
    %199 = vmatpush.msra.mxu0 0.0
    %200 = vmatpush.msra.mxu0 0.0
    %201 = vmatpush.msra.mxu0 0.0
    %202 = vmatpush.msra.mxu0 0.0
    %203 = vmatpush.msra.mxu0 %v180
    %204 = vmatmul.f32.gmra.mxu0 %v178
    %v205 = vpop.f32.mrf.mxu0
    %v206 = vadd.f32 %v168, %v205
    %207 = vdwg.mxu0
    %208 = vmatpush.msra.mxu0 0.0
    %209 = vmatpush.msra.mxu0 0.0
    %210 = vmatpush.msra.mxu0 0.0
    %211 = vmatpush.msra.mxu0 0.0
    %212 = vmatpush.msra.mxu0 0.0
    %213 = vmatpush.msra.mxu0 0.0
    %214 = vmatpush.msra.mxu0 0.0
    %215 = vmatpush.msra.mxu0 0.0
    %216 = vmatpush.msra.mxu0 0.0
    %217 = vmatpush.msra.mxu0 0.0
    %218 = vmatpush.msra.mxu0 0.0
    %219 = vmatpush.msra.mxu0 0.0
    %220 = vmatpush.msra.mxu0 0.0
    %221 = vmatpush.msra.mxu0 0.0
    %222 = vmatpush.msra.mxu0 0.0
    %223 = vmatpush.msra.mxu0 %v182
    %224 = vmatmul.f32.gmra.mxu0 %v178
    %v225 = vpop.f32.mrf.mxu0
    %v226 = vadd.f32 %v168, %v225
    %227 = vdwg.mxu0
    %228 = vmatpush.msra.mxu0 0.0
    %229 = vmatpush.msra.mxu0 0.0
    %230 = vmatpush.msra.mxu0 0.0
    %231 = vmatpush.msra.mxu0 0.0
    %232 = vmatpush.msra.mxu0 0.0
    %233 = vmatpush.msra.mxu0 0.0
    %234 = vmatpush.msra.mxu0 0.0
    %235 = vmatpush.msra.mxu0 0.0
    %236 = vmatpush.msra.mxu0 0.0
    %237 = vmatpush.msra.mxu0 0.0
    %238 = vmatpush.msra.mxu0 0.0
    %239 = vmatpush.msra.mxu0 0.0
    %240 = vmatpush.msra.mxu0 0.0
    %241 = vmatpush.msra.mxu0 0.0
    %242 = vmatpush.msra.mxu0 0.0
    %243 = vmatpush.msra.mxu0 %v184
    %244 = vmatmul.f32.gmra.mxu0 %v178
    %v245 = vpop.f32.mrf.mxu0
    %v246 = vadd.f32 %v168, %v245
    %247 = vdwg.mxu0
    %248 = vmatpush.msra.mxu0 0.0
    %249 = vmatpush.msra.mxu0 0.0
    %250 = vmatpush.msra.mxu0 0.0
    %251 = vmatpush.msra.mxu0 0.0
    %252 = vmatpush.msra.mxu0 0.0
    %253 = vmatpush.msra.mxu0 0.0
    %254 = vmatpush.msra.mxu0 0.0
    %255 = vmatpush.msra.mxu0 0.0
    %256 = vmatpush.msra.mxu0 0.0
    %257 = vmatpush.msra.mxu0 0.0
    %258 = vmatpush.msra.mxu0 0.0
    %259 = vmatpush.msra.mxu0 0.0
    %260 = vmatpush.msra.mxu0 0.0
    %261 = vmatpush.msra.mxu0 0.0
    %262 = vmatpush.msra.mxu0 0.0
    %263 = vmatpush.msra.mxu0 %v186
    %264 = vmatmul.f32.gmra.mxu0 %v178
    %v265 = vpop.f32.mrf.mxu0
    %v266 = vadd.f32 %v168, %v265
    %267 = vdwg.mxu0
    %v268 = vmax.f32 %v206, 0.0
    %v269 = vmax.f32 %v226, 0.0
    %v270 = vmax.f32 %v246, 0.0
    %v271 = vmax.f32 %v266, 0.0
    %v272 = vmax.f32 %v159, %v160
    %v273 = vmax.f32 %v161, %v162
    %v274 = vmax.f32 %v272, %v273
    %vm275 = vcmp.eq.f32.partialorder %v159, %v274
    %vm276 = vcmp.eq.f32.partialorder %v160, %v274
    %vm277 = vcmp.eq.f32.partialorder %v161, %v274
    %v278 = vsel %vm277, 2, 3
    %v279 = vsel %vm276, 1, %v278
    %v280 = vsel %vm275, 0, %v279
    %v281 = vmax.f32 %v268, %v269
    %v282 = vmax.f32 %v270, %v271
    %v283 = vmax.f32 %v281, %v282
    %v285 = vrot.slane %v274, 1
    %286 = vrot.lane.b32.xlu0 %v285, 64
    %v287 = vpop.permute.xlu0 %286
    %v289 = vrot.slane %v274, 2
    %v291 = vrot.slane %v274, 3
    %292 = vrot.lane.b32.xlu0 %v291, 64
    %v293 = vpop.permute.xlu0 %292
    %v295 = vrot.slane %v274, 4
    %v297 = vrot.slane %v274, 5
    %298 = vrot.lane.b32.xlu0 %v297, 64
    %v299 = vpop.permute.xlu0 %298
    %v301 = vrot.slane %v274, 6
    %v303 = vrot.slane %v274, 7
    %304 = vrot.lane.b32.xlu0 %v303, 64
    %v305 = vpop.permute.xlu0 %304
    %vm307 = vcmask 523264
    %v308 = vsel %vm307, %v274, %v287
    %v309 = vsel %vm307, %v289, %v293
    %v310 = vsel %vm307, %v295, %v299
    %v311 = vsel %vm307, %v301, %v305
    %312 = vrot.lane.b32.xlu0 %v274, 64
    %v313 = vpop.permute.xlu0 %312
    %316 = vrot.lane.b32.xlu0 %v289, 64
    %v317 = vpop.permute.xlu0 %316
    %320 = vrot.lane.b32.xlu0 %v295, 64
    %v321 = vpop.permute.xlu0 %320
    %324 = vrot.lane.b32.xlu0 %v301, 64
    %v325 = vpop.permute.xlu0 %324
    %v328 = vsel %vm307, %v313, %v285
    %v329 = vsel %vm307, %v317, %v291
    %v330 = vsel %vm307, %v321, %v297
    %v331 = vsel %vm307, %v325, %v303
    %v336 = vrot.slane %v328, 7
    %v337 = vrot.slane %v329, 7
    %v338 = vrot.slane %v330, 7
    %v339 = vrot.slane %v331, 7
    %vm344 = vcmask 1040384
    %v345 = vsel %vm344, %v308, %v336
    %v346 = vsel %vm344, %v309, %v337
    %v347 = vsel %vm344, %v310, %v338
    %v348 = vsel %vm344, %v311, %v339
    %v349 = vld [vmem:[%s4] sm:$0xff]
    %v350 = vld [vmem:[%s4 + $0x8] sm:$0xff]
    %v351 = vld [vmem:[%s4 + $0x10] sm:$0xff]
    %v352 = vld [vmem:[%s4 + $0x18] sm:$0xff]
    %v353 = vld [vmem:[%s4 + $0x20] sm:$0xff]
    %v354 = vld [vmem:[%s4 + $0x28] sm:$0xff]
    %v355 = vld [vmem:[%s4 + $0x30] sm:$0xff]
    %v356 = vld [vmem:[%s4 + $0x38] sm:$0xff]
    %v357 = vld [vmem:[%s4 + $0x40] sm:$0xff]
    %v358 = vld [vmem:[%s4 + $0x48] sm:$0xff]
    %v359 = vld [vmem:[%s4 + $0x50] sm:$0xff]
    %v360 = vld [vmem:[%s4 + $0x58] sm:$0xff]
    %v361 = vld [vmem:[%s4 + $0x60] sm:$0xff]
    %v362 = vld [vmem:[%s4 + $0x68] sm:$0xff]
    %v363 = vld [vmem:[%s4 + $0x70] sm:$0xff]
    %v364 = vld [vmem:[%s4 + $0x78] sm:$0xff]
    %v365 = vld [vmem:[%s4 + $0x80] sm:$0xff]
    %v366 = vld [vmem:[%s4 + $0x88] sm:$0xff]
    %v367 = vld [vmem:[%s4 + $0x90] sm:$0xff]
    %v368 = vld [vmem:[%s4 + $0x98] sm:$0xff]
    %v369 = vld [vmem:[%s4 + $0xa0] sm:$0xff]
    %v370 = vld [vmem:[%s4 + $0xa8] sm:$0xff]
    %v371 = vld [vmem:[%s4 + $0xb0] sm:$0xff]
    %v372 = vld [vmem:[%s4 + $0xb8] sm:$0xff]
    %v373 = vld [vmem:[%s4 + $0xc0] sm:$0xff]
    %v374 = vld [vmem:[%s4 + $0xc8] sm:$0xff]
    %v375 = vld [vmem:[%s4 + $0xd0] sm:$0xff]
    %v376 = vld [vmem:[%s4 + $0xd8] sm:$0xff]
    %v377 = vld [vmem:[%s4 + $0xe0] sm:$0xff]
    %v378 = vld [vmem:[%s4 + $0xe8] sm:$0xff]
    %v379 = vld [vmem:[%s4 + $0xf0] sm:$0xff]
    %v380 = vld [vmem:[%s4 + $0xf8] sm:$0xff]
    %v381 = vld [vmem:[%s4 + $0x100] sm:$0xff]
    %v382 = vld [vmem:[%s4 + $0x108] sm:$0xff]
    %v383 = vld [vmem:[%s4 + $0x110] sm:$0xff]
    %v384 = vld [vmem:[%s4 + $0x118] sm:$0xff]
    %v385 = vld [vmem:[%s4 + $0x120] sm:$0xff]
    %v386 = vld [vmem:[%s4 + $0x128] sm:$0xff]
    %v387 = vld [vmem:[%s4 + $0x130] sm:$0xff]
    %v388 = vld [vmem:[%s4 + $0x138] sm:$0xff]
    %v389 = vld [vmem:[%s4 + $0x140] sm:$0xff]
    %v390 = vld [vmem:[%s4 + $0x148] sm:$0xff]
    %v391 = vld [vmem:[%s4 + $0x150] sm:$0xff]
    %v392 = vld [vmem:[%s4 + $0x158] sm:$0xff]
    %v393 = vld [vmem:[%s4 + $0x160] sm:$0xff]
    %v394 = vld [vmem:[%s4 + $0x168] sm:$0xff]
    %v395 = vld [vmem:[%s4 + $0x170] sm:$0xff]
    %v396 = vld [vmem:[%s4 + $0x178] sm:$0xff]
    %v397 = vld [vmem:[%s4 + $0x180] sm:$0xff]
    %v398 = vld [vmem:[%s4 + $0x188] sm:$0xff]
    %v399 = vld [vmem:[%s4 + $0x190] sm:$0xff]
    %v400 = vld [vmem:[%s4 + $0x198] sm:$0xff]
    %v401 = vld [vmem:[%s4 + $0x1a0] sm:$0xff]
    %v402 = vld [vmem:[%s4 + $0x1a8] sm:$0xff]
    %v403 = vld [vmem:[%s4 + $0x1b0] sm:$0xff]
    %v404 = vld [vmem:[%s4 + $0x1b8] sm:$0xff]
    %v405 = vld [vmem:[%s4 + $0x1c0] sm:$0xff]
    %v406 = vld [vmem:[%s4 + $0x1c8] sm:$0xff]
    %v407 = vld [vmem:[%s4 + $0x1d0] sm:$0xff]
    %v408 = vld [vmem:[%s4 + $0x1d8] sm:$0xff]
    %v409 = vld [vmem:[%s4 + $0x1e0] sm:$0xff]
    %v410 = vld [vmem:[%s4 + $0x1e8] sm:$0xff]
    %v411 = vld [vmem:[%s4 + $0x1f0] sm:$0xff]
    %v412 = vld [vmem:[%s4 + $0x1f8] sm:$0xff]
    %v413 = vld [vmem:[%s5] sm:$0x1]
    %v415 = vperm.slane %v413, 0
    %417 = vmatpush.msra.mxu0 %v364
    %418 = vmatpush.msra.mxu0 %v363
    %419 = vmatpush.msra.mxu0 %v362
    %420 = vmatpush.msra.mxu0 %v361
    %421 = vmatpush.msra.mxu0 %v360
    %422 = vmatpush.msra.mxu0 %v359
    %423 = vmatpush.msra.mxu0 %v358
    %424 = vmatpush.msra.mxu0 %v357
    %425 = vmatpush.msra.mxu0 %v356
    %426 = vmatpush.msra.mxu0 %v355
    %427 = vmatpush.msra.mxu0 %v354
    %428 = vmatpush.msra.mxu0 %v353
    %429 = vmatpush.msra.mxu0 %v352
    %430 = vmatpush.msra.mxu0 %v351
    %431 = vmatpush.msra.mxu0 %v350
    %432 = vmatpush.msra.mxu0 %v349
    %433 = vmatmul.f32.gmra.mxu0 %v345
    %v434 = vpop.f32.mrf.mxu0
    %v435 = vadd.f32 %v415, %v434
    %436 = vdwg.mxu0
    %437 = vmatpush.msra.mxu0 %v380
    %438 = vmatpush.msra.mxu0 %v379
    %439 = vmatpush.msra.mxu0 %v378
    %440 = vmatpush.msra.mxu0 %v377
    %441 = vmatpush.msra.mxu0 %v376
    %442 = vmatpush.msra.mxu0 %v375
    %443 = vmatpush.msra.mxu0 %v374
    %444 = vmatpush.msra.mxu0 %v373
    %445 = vmatpush.msra.mxu0 %v372
    %446 = vmatpush.msra.mxu0 %v371
    %447 = vmatpush.msra.mxu0 %v370
    %448 = vmatpush.msra.mxu0 %v369
    %449 = vmatpush.msra.mxu0 %v368
    %450 = vmatpush.msra.mxu0 %v367
    %451 = vmatpush.msra.mxu0 %v366
    %452 = vmatpush.msra.mxu0 %v365
    %453 = vmatmul.f32.gmra.mxu0 %v346
    %v454 = vpop.f32.mrf.mxu0
    %v455 = vadd.f32 %v435, %v454
    %456 = vdwg.mxu0
    %457 = vmatpush.msra.mxu0 %v396
    %458 = vmatpush.msra.mxu0 %v395
    %459 = vmatpush.msra.mxu0 %v394
    %460 = vmatpush.msra.mxu0 %v393
    %461 = vmatpush.msra.mxu0 %v392
    %462 = vmatpush.msra.mxu0 %v391
    %463 = vmatpush.msra.mxu0 %v390
    %464 = vmatpush.msra.mxu0 %v389
    %465 = vmatpush.msra.mxu0 %v388
    %466 = vmatpush.msra.mxu0 %v387
    %467 = vmatpush.msra.mxu0 %v386
    %468 = vmatpush.msra.mxu0 %v385
    %469 = vmatpush.msra.mxu0 %v384
    %470 = vmatpush.msra.mxu0 %v383
    %471 = vmatpush.msra.mxu0 %v382
    %472 = vmatpush.msra.mxu0 %v381
    %473 = vmatmul.f32.gmra.mxu0 %v347
    %v474 = vpop.f32.mrf.mxu0
    %v475 = vadd.f32 %v455, %v474
    %476 = vdwg.mxu0
    %477 = vmatpush.msra.mxu0 %v412
    %478 = vmatpush.msra.mxu0 %v411
    %479 = vmatpush.msra.mxu0 %v410
    %480 = vmatpush.msra.mxu0 %v409
    %481 = vmatpush.msra.mxu0 %v408
    %482 = vmatpush.msra.mxu0 %v407
    %483 = vmatpush.msra.mxu0 %v406
    %484 = vmatpush.msra.mxu0 %v405
    %485 = vmatpush.msra.mxu0 %v404
    %486 = vmatpush.msra.mxu0 %v403
    %487 = vmatpush.msra.mxu0 %v402
    %488 = vmatpush.msra.mxu0 %v401
    %489 = vmatpush.msra.mxu0 %v400
    %490 = vmatpush.msra.mxu0 %v399
    %491 = vmatpush.msra.mxu0 %v398
    %492 = vmatpush.msra.mxu0 %v397
    %493 = vmatmul.f32.gmra.mxu0 %v348
    %v494 = vpop.f32.mrf.mxu0
    %v495 = vadd.f32 %v475, %v494
    %496 = vdwg.mxu0
    %v498 = vrot.slane %v283, 1
    %499 = vrot.lane.b32.xlu0 %v498, 64
    %v500 = vpop.permute.xlu0 %499
    %v502 = vrot.slane %v283, 2
    %v504 = vrot.slane %v283, 3
    %505 = vrot.lane.b32.xlu0 %v504, 64
    %v506 = vpop.permute.xlu0 %505
    %v508 = vrot.slane %v283, 4
    %v510 = vrot.slane %v283, 5
    %511 = vrot.lane.b32.xlu0 %v510, 64
    %v512 = vpop.permute.xlu0 %511
    %v514 = vrot.slane %v283, 6
    %v516 = vrot.slane %v283, 7
    %517 = vrot.lane.b32.xlu0 %v516, 64
    %v518 = vpop.permute.xlu0 %517
    %v520 = vsel %vm307, %v283, %v500
    %v521 = vsel %vm307, %v502, %v506
    %v522 = vsel %vm307, %v508, %v512
    %v523 = vsel %vm307, %v514, %v518
    %524 = vrot.lane.b32.xlu0 %v283, 64
    %v525 = vpop.permute.xlu0 %524
    %528 = vrot.lane.b32.xlu0 %v502, 64
    %v529 = vpop.permute.xlu0 %528
    %532 = vrot.lane.b32.xlu0 %v508, 64
    %v533 = vpop.permute.xlu0 %532
    %536 = vrot.lane.b32.xlu0 %v514, 64
    %v537 = vpop.permute.xlu0 %536
    %v540 = vsel %vm307, %v525, %v498
    %v541 = vsel %vm307, %v529, %v504
    %v542 = vsel %vm307, %v533, %v510
    %v543 = vsel %vm307, %v537, %v516
    %v548 = vrot.slane %v540, 7
    %v549 = vrot.slane %v541, 7
    %v550 = vrot.slane %v542, 7
    %v551 = vrot.slane %v543, 7
    %v556 = vsel %vm344, %v520, %v548
    %v557 = vsel %vm344, %v521, %v549
    %v558 = vsel %vm344, %v522, %v550
    %v559 = vsel %vm344, %v523, %v551
    %v560 = vld [vmem:[%s8] sm:$0xff]
    %v561 = vld [vmem:[%s8 + $0x8] sm:$0xff]
    %v562 = vld [vmem:[%s8 + $0x10] sm:$0xff]
    %v563 = vld [vmem:[%s8 + $0x18] sm:$0xff]
    %v564 = vld [vmem:[%s8 + $0x20] sm:$0xff]
    %v565 = vld [vmem:[%s8 + $0x28] sm:$0xff]
    %v566 = vld [vmem:[%s8 + $0x30] sm:$0xff]
    %v567 = vld [vmem:[%s8 + $0x38] sm:$0xff]
    %v568 = vld [vmem:[%s8 + $0x40] sm:$0xff]
    %v569 = vld [vmem:[%s8 + $0x48] sm:$0xff]
    %v570 = vld [vmem:[%s8 + $0x50] sm:$0xff]
    %v571 = vld [vmem:[%s8 + $0x58] sm:$0xff]
    %v572 = vld [vmem:[%s8 + $0x60] sm:$0xff]
    %v573 = vld [vmem:[%s8 + $0x68] sm:$0xff]
    %v574 = vld [vmem:[%s8 + $0x70] sm:$0xff]
    %v575 = vld [vmem:[%s8 + $0x78] sm:$0xff]
    %v576 = vld [vmem:[%s8 + $0x80] sm:$0xff]
    %v577 = vld [vmem:[%s8 + $0x88] sm:$0xff]
    %v578 = vld [vmem:[%s8 + $0x90] sm:$0xff]
    %v579 = vld [vmem:[%s8 + $0x98] sm:$0xff]
    %v580 = vld [vmem:[%s8 + $0xa0] sm:$0xff]
    %v581 = vld [vmem:[%s8 + $0xa8] sm:$0xff]
    %v582 = vld [vmem:[%s8 + $0xb0] sm:$0xff]
    %v583 = vld [vmem:[%s8 + $0xb8] sm:$0xff]
    %v584 = vld [vmem:[%s8 + $0xc0] sm:$0xff]
    %v585 = vld [vmem:[%s8 + $0xc8] sm:$0xff]
    %v586 = vld [vmem:[%s8 + $0xd0] sm:$0xff]
    %v587 = vld [vmem:[%s8 + $0xd8] sm:$0xff]
    %v588 = vld [vmem:[%s8 + $0xe0] sm:$0xff]
    %v589 = vld [vmem:[%s8 + $0xe8] sm:$0xff]
    %v590 = vld [vmem:[%s8 + $0xf0] sm:$0xff]
    %v591 = vld [vmem:[%s8 + $0xf8] sm:$0xff]
    %v592 = vld [vmem:[%s8 + $0x100] sm:$0xff]
    %v593 = vld [vmem:[%s8 + $0x108] sm:$0xff]
    %v594 = vld [vmem:[%s8 + $0x110] sm:$0xff]
    %v595 = vld [vmem:[%s8 + $0x118] sm:$0xff]
    %v596 = vld [vmem:[%s8 + $0x120] sm:$0xff]
    %v597 = vld [vmem:[%s8 + $0x128] sm:$0xff]
    %v598 = vld [vmem:[%s8 + $0x130] sm:$0xff]
    %v599 = vld [vmem:[%s8 + $0x138] sm:$0xff]
    %v600 = vld [vmem:[%s8 + $0x140] sm:$0xff]
    %v601 = vld [vmem:[%s8 + $0x148] sm:$0xff]
    %v602 = vld [vmem:[%s8 + $0x150] sm:$0xff]
    %v603 = vld [vmem:[%s8 + $0x158] sm:$0xff]
    %v604 = vld [vmem:[%s8 + $0x160] sm:$0xff]
    %v605 = vld [vmem:[%s8 + $0x168] sm:$0xff]
    %v606 = vld [vmem:[%s8 + $0x170] sm:$0xff]
    %v607 = vld [vmem:[%s8 + $0x178] sm:$0xff]
    %v608 = vld [vmem:[%s8 + $0x180] sm:$0xff]
    %v609 = vld [vmem:[%s8 + $0x188] sm:$0xff]
    %v610 = vld [vmem:[%s8 + $0x190] sm:$0xff]
    %v611 = vld [vmem:[%s8 + $0x198] sm:$0xff]
    %v612 = vld [vmem:[%s8 + $0x1a0] sm:$0xff]
    %v613 = vld [vmem:[%s8 + $0x1a8] sm:$0xff]
    %v614 = vld [vmem:[%s8 + $0x1b0] sm:$0xff]
    %v615 = vld [vmem:[%s8 + $0x1b8] sm:$0xff]
    %v616 = vld [vmem:[%s8 + $0x1c0] sm:$0xff]
    %v617 = vld [vmem:[%s8 + $0x1c8] sm:$0xff]
    %v618 = vld [vmem:[%s8 + $0x1d0] sm:$0xff]
    %v619 = vld [vmem:[%s8 + $0x1d8] sm:$0xff]
    %v620 = vld [vmem:[%s8 + $0x1e0] sm:$0xff]
    %v621 = vld [vmem:[%s8 + $0x1e8] sm:$0xff]
    %v622 = vld [vmem:[%s8 + $0x1f0] sm:$0xff]
    %v623 = vld [vmem:[%s8 + $0x1f8] sm:$0xff]
    %v624 = vld [vmem:[%s9] sm:$0x1]
    %v626 = vperm.slane %v624, 0
    %628 = vmatpush.msra.mxu0 %v575
    %629 = vmatpush.msra.mxu0 %v574
    %630 = vmatpush.msra.mxu0 %v573
    %631 = vmatpush.msra.mxu0 %v572
    %632 = vmatpush.msra.mxu0 %v571
    %633 = vmatpush.msra.mxu0 %v570
    %634 = vmatpush.msra.mxu0 %v569
    %635 = vmatpush.msra.mxu0 %v568
    %636 = vmatpush.msra.mxu0 %v567
    %637 = vmatpush.msra.mxu0 %v566
    %638 = vmatpush.msra.mxu0 %v565
    %639 = vmatpush.msra.mxu0 %v564
    %640 = vmatpush.msra.mxu0 %v563
    %641 = vmatpush.msra.mxu0 %v562
    %642 = vmatpush.msra.mxu0 %v561
    %643 = vmatpush.msra.mxu0 %v560
    %644 = vmatmul.f32.gmra.mxu0 %v556
    %v645 = vpop.f32.mrf.mxu0
    %v646 = vadd.f32 %v626, %v645
    %647 = vdwg.mxu0
    %648 = vmatpush.msra.mxu0 %v591
    %649 = vmatpush.msra.mxu0 %v590
    %650 = vmatpush.msra.mxu0 %v589
    %651 = vmatpush.msra.mxu0 %v588
    %652 = vmatpush.msra.mxu0 %v587
    %653 = vmatpush.msra.mxu0 %v586
    %654 = vmatpush.msra.mxu0 %v585
    %655 = vmatpush.msra.mxu0 %v584
    %656 = vmatpush.msra.mxu0 %v583
    %657 = vmatpush.msra.mxu0 %v582
    %658 = vmatpush.msra.mxu0 %v581
    %659 = vmatpush.msra.mxu0 %v580
    %660 = vmatpush.msra.mxu0 %v579
    %661 = vmatpush.msra.mxu0 %v578
    %662 = vmatpush.msra.mxu0 %v577
    %663 = vmatpush.msra.mxu0 %v576
    %664 = vmatmul.f32.gmra.mxu0 %v557
    %v665 = vpop.f32.mrf.mxu0
    %v666 = vadd.f32 %v646, %v665
    %667 = vdwg.mxu0
    %668 = vmatpush.msra.mxu0 %v607
    %669 = vmatpush.msra.mxu0 %v606
    %670 = vmatpush.msra.mxu0 %v605
    %671 = vmatpush.msra.mxu0 %v604
    %672 = vmatpush.msra.mxu0 %v603
    %673 = vmatpush.msra.mxu0 %v602
    %674 = vmatpush.msra.mxu0 %v601
    %675 = vmatpush.msra.mxu0 %v600
    %676 = vmatpush.msra.mxu0 %v599
    %677 = vmatpush.msra.mxu0 %v598
    %678 = vmatpush.msra.mxu0 %v597
    %679 = vmatpush.msra.mxu0 %v596
    %680 = vmatpush.msra.mxu0 %v595
    %681 = vmatpush.msra.mxu0 %v594
    %682 = vmatpush.msra.mxu0 %v593
    %683 = vmatpush.msra.mxu0 %v592
    %684 = vmatmul.f32.gmra.mxu0 %v558
    %v685 = vpop.f32.mrf.mxu0
    %v686 = vadd.f32 %v666, %v685
    %687 = vdwg.mxu0
    %688 = vmatpush.msra.mxu0 %v623
    %689 = vmatpush.msra.mxu0 %v622
    %690 = vmatpush.msra.mxu0 %v621
    %691 = vmatpush.msra.mxu0 %v620
    %692 = vmatpush.msra.mxu0 %v619
    %693 = vmatpush.msra.mxu0 %v618
    %694 = vmatpush.msra.mxu0 %v617
    %695 = vmatpush.msra.mxu0 %v616
    %696 = vmatpush.msra.mxu0 %v615
    %697 = vmatpush.msra.mxu0 %v614
    %698 = vmatpush.msra.mxu0 %v613
    %699 = vmatpush.msra.mxu0 %v612
    %700 = vmatpush.msra.mxu0 %v611
    %701 = vmatpush.msra.mxu0 %v610
    %702 = vmatpush.msra.mxu0 %v609
    %703 = vmatpush.msra.mxu0 %v608
    %704 = vmatmul.f32.gmra.mxu0 %v559
    %v705 = vpop.f32.mrf.mxu0
    %v706 = vadd.f32 %v686, %v705
    %707 = vdwg.mxu0
    %v708 = vld [vmem:[%s1] sm:$0x3]
    %v709 = vadd.f32 %v495, %v708
    %v710 = vmul.f32 %v709, 0.5
    %vm711 = vcmask 123904
    %v712 = vsel %vm711, %v710, -inf
    %713 = vmax.xlane.f32.xlu0 %v712
    %v714 = vpop.xlane.xlu0 %713
    %v715 = vsub.f32 %v710, %v714
    %v716 = vmul.f32 %v715, 1.442695
    %v717 = vpow.pop %v716
    %v718 = vsel %vm711, %v717, 0.0
    %719 = vadd.xlane.f32.xlu0 %v718
    %v720 = vpop.xlane.xlu0 %719
    %v721 = vrcp.pop %v720
    %v722 = vmul.f32 %v720, %v721
    %v723 = vsub.f32 1.0, %v722
    %v724 = vmul.f32 %v721, %v723
    %v725 = vadd.f32 %v721, %v724
    %vm726 = vweird.f32 %v720
    %vm727 = vweird.f32 %v721
    %vm728 = vmor %vm726, %vm727
    %v729 = vsel %vm728, %v721, %v725
    %v730 = vand.u32 2147483647, %v720
    %vm731 = vcmp.eq.f32.partialorder %v730, 8.507059e+37
    %v732 = vand.u32 %v720, 2147483648
    %v733 = vor.u32 1.1754944e-38, %v732
    %v734 = vsel %vm731, %v733, %v729
    %v735 = vmul.f32 %v717, %v734
    %v736 = vlaneseq
    %v737 = vand.u32 %v736, 127
    %v738 = vsel %vm711, %v735, -inf
    %739 = vmax.xlane.f32.xlu0 %v738
    %v740 = vpop.xlane.xlu0 %739
    %vm741 = vcmp.eq.f32.partialorder %v735, %v740
    %v742 = vsel %vm741, %v737, 16
    %v743 = vsel %vm711, %v742, 2147483647
    %v744 = vand.u32 %v743, 65535
    %v745 = vshra.s32 %v743, 16
    %v746 = vcvt.s32.f32 %v744
    %v747 = vcvt.s32.f32 %v745
    %748 = vmin.xlane.f32.xlu0 %v747
    %v749 = vpop.xlane.xlu0 %748
    %vm750 = vcmp.eq.f32.partialorder %v747, %v749
    %v751 = vsel %vm750, %v746, inf
    %752 = vmin.xlane.f32.xlu0 %v751
    %v753 = vpop.xlane.xlu0 %752
    %v754 = vcvt.f32.s32 %v753
    %v755 = vcvt.f32.s32 %v749
    %v756 = vshll.u32 %v755, 16
    %v757 = vadd.s32 %v756, %v754
    %vm758 = vcmp.eq.s32.totalorder %v737, %v757
    %v759 = vsel %vm758, 1.0, 0.0
    %761 = vrot.lane.b32.xlu0 %v706, 16
    %v762 = vpop.permute.xlu0 %761
    %vm764 = vcmask 130048
    %v765 = vsel %vm764, %v759, %v762
    %v766 = vld [vmem:[%s10] sm:$0xff]
    %v767 = vld [vmem:[%s10 + $0x8] sm:$0xff]
    %v768 = vld [vmem:[%s10 + $0x10] sm:$0xff]
    %v769 = vld [vmem:[%s10 + $0x18] sm:$0xff]
    %v770 = vld [vmem:[%s10 + $0x20] sm:$0xff]
    %v771 = vld [vmem:[%s10 + $0x28] sm:$0xff]
    %v772 = vld [vmem:[%s10 + $0x30] sm:$0xff]
    %v773 = vld [vmem:[%s10 + $0x38] sm:$0xff]
    %v774 = vld [vmem:[%s10 + $0x40] sm:$0xff]
    %v775 = vld [vmem:[%s10 + $0x48] sm:$0xff]
    %v776 = vld [vmem:[%s10 + $0x50] sm:$0xff]
    %v777 = vld [vmem:[%s10 + $0x58] sm:$0xff]
    %v778 = vld [vmem:[%s10 + $0x60] sm:$0xff]
    %v779 = vld [vmem:[%s10 + $0x68] sm:$0xff]
    %v780 = vld [vmem:[%s10 + $0x70] sm:$0xff]
    %v781 = vld [vmem:[%s10 + $0x78] sm:$0xff]
    %v782 = vld [vmem:[%s11] sm:$0xf]
    %v784 = vperm.slane %v782, 0
    %v785 = vperm.slane %v782, 1
    %v786 = vperm.slane %v782, 2
    %v787 = vperm.slane %v782, 3
    %vm792 = vcmask 261120
    %v794 = vsel %vm792, %v765, 0
    %796 = vmatpush.msra.mxu0 0.0
    %797 = vmatpush.msra.mxu0 0.0
    %798 = vmatpush.msra.mxu0 0.0
    %799 = vmatpush.msra.mxu0 0.0
    %800 = vmatpush.msra.mxu0 0.0
    %801 = vmatpush.msra.mxu0 0.0
    %802 = vmatpush.msra.mxu0 0.0
    %803 = vmatpush.msra.mxu0 0.0
    %804 = vmatpush.msra.mxu0 0.0
    %805 = vmatpush.msra.mxu0 0.0
    %806 = vmatpush.msra.mxu0 0.0
    %807 = vmatpush.msra.mxu0 0.0
    %808 = vmatpush.msra.mxu0 %v778
    %809 = vmatpush.msra.mxu0 %v774
    %810 = vmatpush.msra.mxu0 %v770
    %811 = vmatpush.msra.mxu0 %v766
    %812 = vmatmul.f32.gmra.mxu0 %v794
    %v813 = vpop.f32.mrf.mxu0
    %v814 = vadd.f32 %v784, %v813
    %815 = vdwg.mxu0
    %816 = vmatpush.msra.mxu0 0.0
    %817 = vmatpush.msra.mxu0 0.0
    %818 = vmatpush.msra.mxu0 0.0
    %819 = vmatpush.msra.mxu0 0.0
    %820 = vmatpush.msra.mxu0 0.0
    %821 = vmatpush.msra.mxu0 0.0
    %822 = vmatpush.msra.mxu0 0.0
    %823 = vmatpush.msra.mxu0 0.0
    %824 = vmatpush.msra.mxu0 0.0
    %825 = vmatpush.msra.mxu0 0.0
    %826 = vmatpush.msra.mxu0 0.0
    %827 = vmatpush.msra.mxu0 0.0
    %828 = vmatpush.msra.mxu0 %v779
    %829 = vmatpush.msra.mxu0 %v775
    %830 = vmatpush.msra.mxu0 %v771
    %831 = vmatpush.msra.mxu0 %v767
    %832 = vmatmul.f32.gmra.mxu0 %v794
    %v833 = vpop.f32.mrf.mxu0
    %v834 = vadd.f32 %v785, %v833
    %835 = vdwg.mxu0
    %836 = vmatpush.msra.mxu0 0.0
    %837 = vmatpush.msra.mxu0 0.0
    %838 = vmatpush.msra.mxu0 0.0
    %839 = vmatpush.msra.mxu0 0.0
    %840 = vmatpush.msra.mxu0 0.0
    %841 = vmatpush.msra.mxu0 0.0
    %842 = vmatpush.msra.mxu0 0.0
    %843 = vmatpush.msra.mxu0 0.0
    %844 = vmatpush.msra.mxu0 0.0
    %845 = vmatpush.msra.mxu0 0.0
    %846 = vmatpush.msra.mxu0 0.0
    %847 = vmatpush.msra.mxu0 0.0
    %848 = vmatpush.msra.mxu0 %v780
    %849 = vmatpush.msra.mxu0 %v776
    %850 = vmatpush.msra.mxu0 %v772
    %851 = vmatpush.msra.mxu0 %v768
    %852 = vmatmul.f32.gmra.mxu0 %v794
    %v853 = vpop.f32.mrf.mxu0
    %v854 = vadd.f32 %v786, %v853
    %855 = vdwg.mxu0
    %856 = vmatpush.msra.mxu0 0.0
    %857 = vmatpush.msra.mxu0 0.0
    %858 = vmatpush.msra.mxu0 0.0
    %859 = vmatpush.msra.mxu0 0.0
    %860 = vmatpush.msra.mxu0 0.0
    %861 = vmatpush.msra.mxu0 0.0
    %862 = vmatpush.msra.mxu0 0.0
    %863 = vmatpush.msra.mxu0 0.0
    %864 = vmatpush.msra.mxu0 0.0
    %865 = vmatpush.msra.mxu0 0.0
    %866 = vmatpush.msra.mxu0 0.0
    %867 = vmatpush.msra.mxu0 0.0
    %868 = vmatpush.msra.mxu0 %v781
    %869 = vmatpush.msra.mxu0 %v777
    %870 = vmatpush.msra.mxu0 %v773
    %871 = vmatpush.msra.mxu0 %v769
    %872 = vmatmul.f32.gmra.mxu0 %v794
    %v873 = vpop.f32.mrf.mxu0
    %v874 = vadd.f32 %v787, %v873
    %875 = vdwg.mxu0
    %v876 = vmax.f32 %v814, 0.0
    %v877 = vmax.f32 %v834, 0.0
    %v878 = vmax.f32 %v854, 0.0
    %v879 = vmax.f32 %v874, 0.0
    %v881 = vrot.slane %v876, 1
    %882 = vrot.lane.b32.xlu0 %v881, 64
    %v883 = vpop.permute.xlu0 %882
    %v885 = vsel %vm307, %v876, %v883
    %886 = vrot.lane.b32.xlu0 %v876, 64
    %v887 = vpop.permute.xlu0 %886
    %v890 = vsel %vm307, %v887, %v881
    %v892 = vrot.slane %v877, 1
    %893 = vrot.lane.b32.xlu0 %v892, 64
    %v894 = vpop.permute.xlu0 %893
    %v896 = vsel %vm307, %v877, %v894
    %897 = vrot.lane.b32.xlu0 %v877, 64
    %v898 = vpop.permute.xlu0 %897
    %v901 = vsel %vm307, %v898, %v892
    %v903 = vrot.slane %v878, 1
    %904 = vrot.lane.b32.xlu0 %v903, 64
    %v905 = vpop.permute.xlu0 %904
    %v907 = vsel %vm307, %v878, %v905
    %908 = vrot.lane.b32.xlu0 %v878, 64
    %v909 = vpop.permute.xlu0 %908
    %v912 = vsel %vm307, %v909, %v903
    %v914 = vrot.slane %v879, 1
    %915 = vrot.lane.b32.xlu0 %v914, 64
    %v916 = vpop.permute.xlu0 %915
    %v918 = vsel %vm307, %v879, %v916
    %919 = vrot.lane.b32.xlu0 %v879, 64
    %v920 = vpop.permute.xlu0 %919
    %v923 = vsel %vm307, %v920, %v914
    %v925 = vrot.slane %v890, 7
    %v928 = vrot.slane %v896, 6
    %v931 = vrot.slane %v901, 5
    %v934 = vrot.slane %v907, 4
    %v937 = vrot.slane %v912, 3
    %v940 = vrot.slane %v918, 2
    %v943 = vrot.slane %v923, 1
    %v945 = vsel %vm344, %v885, %v925
    %vm946 = vcmask 1041408
    %v947 = vsel %vm946, %v945, %v928
    %vm948 = vcmask 1042432
    %v949 = vsel %vm948, %v947, %v931
    %v950 = vsel %vm70, %v949, %v934
    %vm951 = vcmask 1044480
    %v952 = vsel %vm951, %v950, %v937
    %vm953 = vcmask 1045504
    %v954 = vsel %vm953, %v952, %v940
    %vm955 = vcmask 1046528
    %v956 = vsel %vm955, %v954, %v943
    %vm957 = vcmp.eq.s32.totalorder %v280, 0
    %v958 = vsel %vm957, %v956, 0.0
    %vm959 = vcmp.eq.s32.totalorder %v280, 1
    %v960 = vsel %vm959, %v956, 0.0
    %vm961 = vcmp.eq.s32.totalorder %v280, 2
    %v962 = vsel %vm961, %v956, 0.0
    %vm963 = vcmp.eq.s32.totalorder %v280, 3
    %v964 = vsel %vm963, %v956, 0.0
    %v965 = vld [vmem:[%s12] sm:$0xf]
    %v966 = vld [vmem:[%s13] sm:$0xf]
    %968 = vset.pattern.permute.xlu0 0
    %969 = vperm.xlu0 %968, %v966
    %v970 = vpop.permute.xlu0 %969
    %vm972 = vcmask 64512
    %v974 = vsel %vm972, %v965, 0
    %976 = vmatpush.msra.mxu0 0.0
    %977 = vmatpush.msra.mxu0 0.0
    %978 = vmatpush.msra.mxu0 0.0
    %979 = vmatpush.msra.mxu0 0.0
    %980 = vmatpush.msra.mxu0 0.0
    %981 = vmatpush.msra.mxu0 0.0
    %982 = vmatpush.msra.mxu0 0.0
    %983 = vmatpush.msra.mxu0 0.0
    %984 = vmatpush.msra.mxu0 0.0
    %985 = vmatpush.msra.mxu0 0.0
    %986 = vmatpush.msra.mxu0 0.0
    %987 = vmatpush.msra.mxu0 0.0
    %988 = vmatpush.msra.mxu0 0.0
    %989 = vmatpush.msra.mxu0 0.0
    %990 = vmatpush.msra.mxu0 0.0
    %991 = vmatpush.msra.mxu0 %v958
    %992 = vmatmul.f32.gmra.mxu0 %v974
    %v993 = vpop.f32.mrf.mxu0
    %v994 = vadd.f32 %v970, %v993
    %995 = vdwg.mxu0
    %996 = vmatpush.msra.mxu0 0.0
    %997 = vmatpush.msra.mxu0 0.0
    %998 = vmatpush.msra.mxu0 0.0
    %999 = vmatpush.msra.mxu0 0.0
    %1000 = vmatpush.msra.mxu0 0.0
    %1001 = vmatpush.msra.mxu0 0.0
    %1002 = vmatpush.msra.mxu0 0.0
    %1003 = vmatpush.msra.mxu0 0.0
    %1004 = vmatpush.msra.mxu0 0.0
    %1005 = vmatpush.msra.mxu0 0.0
    %1006 = vmatpush.msra.mxu0 0.0
    %1007 = vmatpush.msra.mxu0 0.0
    %1008 = vmatpush.msra.mxu0 0.0
    %1009 = vmatpush.msra.mxu0 0.0
    %1010 = vmatpush.msra.mxu0 0.0
    %1011 = vmatpush.msra.mxu0 %v960
    %1012 = vmatmul.f32.gmra.mxu0 %v974
    %v1013 = vpop.f32.mrf.mxu0
    %v1014 = vadd.f32 %v970, %v1013
    %1015 = vdwg.mxu0
    %1016 = vmatpush.msra.mxu0 0.0
    %1017 = vmatpush.msra.mxu0 0.0
    %1018 = vmatpush.msra.mxu0 0.0
    %1019 = vmatpush.msra.mxu0 0.0
    %1020 = vmatpush.msra.mxu0 0.0
    %1021 = vmatpush.msra.mxu0 0.0
    %1022 = vmatpush.msra.mxu0 0.0
    %1023 = vmatpush.msra.mxu0 0.0
    %1024 = vmatpush.msra.mxu0 0.0
    %1025 = vmatpush.msra.mxu0 0.0
    %1026 = vmatpush.msra.mxu0 0.0
    %1027 = vmatpush.msra.mxu0 0.0
    %1028 = vmatpush.msra.mxu0 0.0
    %1029 = vmatpush.msra.mxu0 0.0
    %1030 = vmatpush.msra.mxu0 0.0
    %1031 = vmatpush.msra.mxu0 %v962
    %1032 = vmatmul.f32.gmra.mxu0 %v974
    %v1033 = vpop.f32.mrf.mxu0
    %v1034 = vadd.f32 %v970, %v1033
    %1035 = vdwg.mxu0
    %1036 = vmatpush.msra.mxu0 0.0
    %1037 = vmatpush.msra.mxu0 0.0
    %1038 = vmatpush.msra.mxu0 0.0
    %1039 = vmatpush.msra.mxu0 0.0
    %1040 = vmatpush.msra.mxu0 0.0
    %1041 = vmatpush.msra.mxu0 0.0
    %1042 = vmatpush.msra.mxu0 0.0
    %1043 = vmatpush.msra.mxu0 0.0
    %1044 = vmatpush.msra.mxu0 0.0
    %1045 = vmatpush.msra.mxu0 0.0
    %1046 = vmatpush.msra.mxu0 0.0
    %1047 = vmatpush.msra.mxu0 0.0
    %1048 = vmatpush.msra.mxu0 0.0
    %1049 = vmatpush.msra.mxu0 0.0
    %1050 = vmatpush.msra.mxu0 0.0
    %1051 = vmatpush.msra.mxu0 %v964
    %1052 = vmatmul.f32.gmra.mxu0 %v974
    %v1053 = vpop.f32.mrf.mxu0
    %v1054 = vadd.f32 %v970, %v1053
    %1055 = vdwg.mxu0
    %v1060 = vrot.slane %v1014, 4
    %v1061 = vrot.slane %v1054, 4
    %v1062 = vsel %vm70, %v994, %v1060
    %v1063 = vsel %vm70, %v1034, %v1061
    %1066 = vst [vmem:[#allocation2] sm:$0xff] %v1062
    %1067 = vst [vmem:[#allocation2 + $0x8] sm:$0xff] %v1063
    // Predicated region
    $region58: #{tpu_custom_call.1} parent=1 // pred_check
      _
    $region59: #{tpu_custom_call.1} parent=1 // pred_check_branch
      %1069 = sbr.rel (0) target = $region61
    $region60: #{tpu_custom_call.1} parent=1 // pred_region
      %1071 = vsyncadd [#allocation3], 0
      %s1073 = sshll.u32 [#allocation2], 4
      %s1074 = int_to_ptr.vmem [resolvable:$true] %s1073
      %s1075 = sshll.u32 %s14, 4
      %s1076 = int_to_ptr.hbm [resolvable:$true] %s1075
      %1078 = dma.vmem_to_hbm [thread:$0]  %s1074, 256, %s1076, [#allocation3]
    $region61: #{tpu_custom_call.1} parent=1 // pred_fallthru
      _
    // Predicated region
    $region62: #{tpu_custom_call.1} parent=1 // pred_check
      _
    $region63: #{tpu_custom_call.1} parent=1 // pred_check_branch
      %1080 = sbr.rel (0) target = $region65
    $region64: #{tpu_custom_call.1} parent=1 // pred_region
      %1082 = dma.done [#allocation3], 256
    $region65: #{tpu_custom_call.1} parent=1 // pred_fallthru
      _
    %1083 = vsyncpa [#allocation3], 1

</llo_original>
